<compile_context>
chip_gen: v5e
topology: v5e:2x2
jax: 0.10.0
libtpu: 0.0.40
codegen_flags: <defaults>
</compile_context>

<pallas_src>
import functools

import numpy as np
import jax
import jax.numpy as jnp
from jax.experimental import pallas as pl
from jax.experimental.pallas import tpu as pltpu


# ----------------------------- Pallas kernels ------------------------------ #

def _flow_kernel(x_ref, cond_ref, w1_ref, b1_ref, w2s_ref, w2t_ref,
                 b2s_ref, b2t_ref, o_ref, *, chalf, n_blocks, rev):
    """Fused cINN flow: all 2*n_blocks coupling halves on one (tm, C) row tile.

    x_ref    : (tm, C)            f32, lane-packed [x1 | x2]
    cond_ref : (tm, Ccond)        bf16 conditioning features
    w1_ref   : (L, chalf+Ccond, H) bf16   L = 2*n_blocks stacked subnet layers
    b1_ref   : (L, 1, H)           f32
    w2s_ref  : (L, H, chalf)       bf16   (scale head)
    w2t_ref  : (L, H, chalf)       bf16   (shift head)
    b2s_ref  : (L, 1, chalf)       f32
    b2t_ref  : (L, 1, chalf)       f32
    o_ref    : (tm, C)             f32, lane-packed [y1 | y2]
    """
    x = x_ref[...]
    x1 = x[:, :chalf]
    x2 = x[:, chalf:]
    cond_b = cond_ref[...]                                     # bf16

    def subnet(xs, layer):
        # pack [xs | cond] along lanes -> single MXU push with K = chalf + Ccond
        inp = jnp.concatenate([xs.astype(jnp.bfloat16), cond_b], axis=-1)
        h = jnp.dot(inp, w1_ref[layer], preferred_element_type=jnp.float32)
        h = jnp.maximum(h + b1_ref[layer], 0.0).astype(jnp.bfloat16)
        s = jnp.tanh(jnp.dot(h, w2s_ref[layer],
                             preferred_element_type=jnp.float32) + b2s_ref[layer])
        t = jnp.dot(h, w2t_ref[layer],
                    preferred_element_type=jnp.float32) + b2t_ref[layer]
        return s, t

    if not rev:
        for blk in range(n_blocks):
            s, t = subnet(x2, 2 * blk)
            x1 = x1 * jnp.exp(s) + t
            s, t = subnet(x1, 2 * blk + 1)
            x2 = x2 * jnp.exp(s) + t
    else:
        for blk in reversed(range(n_blocks)):
            s, t = subnet(x1, 2 * blk + 1)
            x2 = (x2 - t) * jnp.exp(-s)          # exact inverse, single EUP op
            s, t = subnet(x2, 2 * blk)
            x1 = (x1 - t) * jnp.exp(-s)

    o_ref[...] = jnp.concatenate([x1, x2], axis=-1).astype(o_ref.dtype)


def _spkenc_kernel(xa_ref, xp_ref, xn_ref, pool_ref,
                   w1_ref, b1_ref, w2_ref, b2_ref,
                   oa_ref, op_ref, on_ref, *, inv_t):
    """Fused speaker encoder for anchor | positive | negative in one launch.

    x*_ref  : (B*T, C)  f32 time-major activations (one per stream)
    pool_ref: (B, B*T)  f32 block-diagonal ones -> sum over each row-group of T steps
    o*_ref  : (B, E)    f32 embeddings
    """
    def encode(x_ref, o_ref):
        h = jnp.dot(x_ref[...].astype(jnp.bfloat16), w1_ref[...],
                    preferred_element_type=jnp.float32)
        h = jnp.maximum(h + b1_ref[...], 0.0)                       # (B*T, H)
        # mean over T as a pooling matmul: no reshapes, no per-row grid steps.
        hm = jnp.dot(pool_ref[...], h,
                     preferred_element_type=jnp.float32) * inv_t    # (B, H)
        e = jnp.dot(hm.astype(jnp.bfloat16), w2_ref[...],
                    preferred_element_type=jnp.float32) + b2_ref[...]
        o_ref[...] = e.astype(o_ref.dtype)

    encode(xa_ref, oa_ref)
    encode(xp_ref, op_ref)
    encode(xn_ref, on_ref)


# ------------------------------ wrappers ------------------------------------ #

def _row_tiling(m, min_steps=2):
    """Row tile (multiple of 8) and padded row count.

    Picks the largest tile that still yields >= min_steps grid steps (so the
    "parallel" grid axis can shard across both v7x TensorCores); padding is always
    less than one tile.
    """
    for tm in (512, 256, 128, 64, 32, 16, 8):
        pm = ((m + tm - 1) // tm) * tm
        if pm // tm >= min_steps:
            return tm, pm
    pm = ((m + 7) // 8) * 8
    return pm, pm   # degenerate tiny case: single step over everything


def rsa_flow(x2d, cond2d, flowp, rev=False):
    """Whole flow in one pallas_call on time-major 2D activations (M = B*T rows)."""
    m, c = x2d.shape
    chalf = c // 2
    ccond = cond2d.shape[1]
    layers, kin, hid = flowp["w1"].shape
    n_blocks = layers // 2

    tm, pm = _row_tiling(m)
    if pm != m:
        x2d = jnp.pad(x2d, ((0, pm - m), (0, 0)))
        cond2d = jnp.pad(cond2d, ((0, pm - m), (0, 0)))

    out = pl.pallas_call(
        functools.partial(_flow_kernel, chalf=chalf, n_blocks=n_blocks, rev=rev),
        out_shape=jax.ShapeDtypeStruct((pm, c), jnp.float32),
        grid=(pm // tm,),
        in_specs=[
            pl.BlockSpec((tm, c), lambda i: (i, 0)),
            pl.BlockSpec((tm, ccond), lambda i: (i, 0)),
            pl.BlockSpec((layers, kin, hid), lambda i: (0, 0, 0)),
            pl.BlockSpec((layers, 1, hid), lambda i: (0, 0, 0)),
            pl.BlockSpec((layers, hid, chalf), lambda i: (0, 0, 0)),
            pl.BlockSpec((layers, hid, chalf), lambda i: (0, 0, 0)),
            pl.BlockSpec((layers, 1, chalf), lambda i: (0, 0, 0)),
            pl.BlockSpec((layers, 1, chalf), lambda i: (0, 0, 0)),
        ],
        out_specs=pl.BlockSpec((tm, c), lambda i: (i, 0)),
        compiler_params=pltpu.CompilerParams(
            dimension_semantics=("parallel",)),
        # TODO(synk): for scaled-up C/Ccond/H on v7x (64 MiB VMEM), cap tm and/or set
        #             vmem_limit_bytes; irrelevant at these widths.
    )(x2d, cond2d, flowp["w1"], flowp["b1"],
      flowp["w2s"], flowp["w2t"], flowp["b2s"], flowp["b2t"])
    return out[:m]


def spk_enc(xa2d, xp2d, xn2d, encp, batch, t_len):
    """Batched speaker encoder: three (B*T, C) streams -> three (B, E) embeddings."""
    bt, c = xa2d.shape
    hid = encp["w1"].shape[1]
    emb = encp["w2"].shape[1]
    pool = jnp.kron(jnp.eye(batch, dtype=jnp.float32),
                    jnp.ones((1, t_len), jnp.float32))           # (B, B*T) sum-pool

    outs = pl.pallas_call(
        functools.partial(_spkenc_kernel, inv_t=1.0 / t_len),
        out_shape=(jax.ShapeDtypeStruct((batch, emb), jnp.float32),
                   jax.ShapeDtypeStruct((batch, emb), jnp.float32),
                   jax.ShapeDtypeStruct((batch, emb), jnp.float32)),
        grid=(1,),
        in_specs=[
            pl.BlockSpec((bt, c), lambda i: (0, 0)),
            pl.BlockSpec((bt, c), lambda i: (0, 0)),
            pl.BlockSpec((bt, c), lambda i: (0, 0)),
            pl.BlockSpec((batch, bt), lambda i: (0, 0)),
            pl.BlockSpec((c, hid), lambda i: (0, 0)),
            pl.BlockSpec((1, hid), lambda i: (0, 0)),
            pl.BlockSpec((hid, emb), lambda i: (0, 0)),
            pl.BlockSpec((1, emb), lambda i: (0, 0)),
        ],
        out_specs=(pl.BlockSpec((batch, emb), lambda i: (0, 0)),
                   pl.BlockSpec((batch, emb), lambda i: (0, 0)),
                   pl.BlockSpec((batch, emb), lambda i: (0, 0))),
        compiler_params=pltpu.CompilerParams(
            dimension_semantics=("arbitrary",)),
    )(xa2d, xp2d, xn2d, pool, encp["w1"], encp["b1"], encp["w2"], encp["b2"])
    return outs


def rsa_v0_forward(params, x, x_, cond, seg_idx, rev=False):
    """x, x_, cond are NCT (B, C, T); x_ is accepted but unused (matches reference)."""
    del x_  # unused in the reference forward
    b, c, t = x.shape

    # single layout change on entry: NCT -> time-major 2D (B*T, C)
    x_btc = jnp.transpose(x, (0, 2, 1))
    x2d = x_btc.reshape(b * t, c)
    cond2d = jnp.transpose(cond, (0, 2, 1)).reshape(b * t, -1).astype(jnp.bfloat16)

    fp = params["flow"]
    flowp = {"w1": fp["w1"].astype(jnp.bfloat16), "b1": fp["b1"],
             "w2s": fp["w2s"].astype(jnp.bfloat16),
             "w2t": fp["w2t"].astype(jnp.bfloat16),
             "b2s": fp["b2s"], "b2t": fp["b2t"]}
    xout2d = rsa_flow(x2d, cond2d, flowp, rev=rev)               # (B*T, C) f32

    x_out = jnp.transpose(xout2d.reshape(b, t, c), (0, 2, 1))    # back to NCT on exit

    # time-segment shuffle (size-5 segments) as a single gather along T
    xts2d = jnp.take(x_btc, seg_idx, axis=1).reshape(b * t, c)

    ep = params["enc"]
    encp = {"w1": ep["w1"].astype(jnp.bfloat16), "b1": ep["b1"],
            "w2": ep["w2"].astype(jnp.bfloat16), "b2": ep["b2"]}
    anchor_emb, positive_emb, negative_emb = spk_enc(x2d, xts2d, xout2d, encp, b, t)
    return x_out, anchor_emb, positive_emb, negative_emb


# ------------------------------ param init --------------------------------- #

def init_params(key, c, ccond, hid, emb, n_blocks):
    chalf = c // 2
    layers = 2 * n_blocks
    k1, k2, k3, ke1, ke2 = jax.random.split(key, 5)
    flow = {
        "w1": 0.1 * jax.random.normal(k1, (layers, chalf + ccond, hid), jnp.float32),
        "b1": jnp.zeros((layers, 1, hid), jnp.float32),
        "w2s": 0.1 * jax.random.normal(k2, (layers, hid, chalf), jnp.float32),
        "w2t": 0.1 * jax.random.normal(k3, (layers, hid, chalf), jnp.float32),
        "b2s": jnp.zeros((layers, 1, chalf), jnp.float32),
        "b2t": jnp.zeros((layers, 1, chalf), jnp.float32),
    }
    enc = {
        "w1": 0.1 * jax.random.normal(ke1, (c, hid), jnp.float32),
        "b1": jnp.zeros((1, hid), jnp.float32),
        "w2": 0.1 * jax.random.normal(ke2, (hid, emb), jnp.float32),
        "b2": jnp.zeros((1, emb), jnp.float32),
    }
    return {"flow": flow, "enc": enc}


# --------------------------------- main ------------------------------------ #

if __name__ == "__main__":
    B, C, T = 2, 4, 20          # batch, channels (split in half), time (4 segs of 5)
    Ccond, H, E = 4, 32, 16     # cond channels, hidden width, embedding dim
    N_BLOCKS = 2                # cinnb_nums

    root = jax.random.PRNGKey(0)
    kx, kx_, kc, kp, kperm = jax.random.split(root, 5)

    x = jax.random.normal(kx, (B, C, T), jnp.float32)
    x_ = jax.random.normal(kx_, (B, C, T), jnp.float32)
    cond = jax.random.normal(kc, (B, Ccond, T), jnp.float32)
    params = init_params(kp, C, Ccond, H, E, N_BLOCKS)

    # fixed time-segment permutation
    # TODO(synk): the reference reshuffles with Python random.shuffle on every call.
    seg_perm = np.array(jax.random.permutation(kperm, T // 5))
    seg_idx = jnp.asarray(
        np.concatenate([np.arange(int(p) * 5, int(p) * 5 + 5) for p in seg_perm]),
        dtype=jnp.int32)

    fwd = jax.jit(functools.partial(rsa_v0_forward, rev=False))
    x_out, a_emb, p_emb, n_emb = jax.block_until_ready(
        fwd(params, x, x_, cond, seg_idx))

    assert x_out.shape == (B, C, T)
    assert a_emb.shape == (B, E) and p_emb.shape == (B, E) and n_emb.shape == (B, E)
    assert all(bool(jnp.all(jnp.isfinite(o))) for o in (x_out, a_emb, p_emb, n_emb))

    # exercise the reverse (rev=True) coupling path as well
    bwd = jax.jit(functools.partial(rsa_v0_forward, rev=True))
    x_rec, *_ = jax.block_until_ready(bwd(params, x_out, x_, cond, seg_idx))
    assert x_rec.shape == (B, C, T)
    assert bool(jnp.all(jnp.isfinite(x_rec)))

    print("KERNEL_OK")
</pallas_src>

<mosaic_0001>
module attributes {stable_mosaic.version = 11 : i64} {
  func.func @_flow_kernel(%arg0: i32, %arg1: memref<32x4xf32, #tpu.memory_space<vmem>>, %arg2: memref<32x4xbf16, #tpu.memory_space<vmem>>, %arg3: memref<4x6x32xbf16, #tpu.memory_space<vmem>>, %arg4: memref<4x1x32xf32, #tpu.memory_space<vmem>>, %arg5: memref<4x32x2xbf16, #tpu.memory_space<vmem>>, %arg6: memref<4x32x2xbf16, #tpu.memory_space<vmem>>, %arg7: memref<4x1x2xf32, #tpu.memory_space<vmem>>, %arg8: memref<4x1x2xf32, #tpu.memory_space<vmem>>, %arg9: memref<32x4xf32, #tpu.memory_space<vmem>>) attributes {dimension_semantics = [#tpu.dimension_semantics<parallel>], iteration_bounds = array<i64: 2>, scalar_prefetch = 0 : i64, scratch_operands = 0 : i64, tpu.core_type = #tpu.core_type<tc>, window_params = [{transform_indices = @transform_0, window_bounds = array<i64: 32, 4>}, {transform_indices = @transform_1, window_bounds = array<i64: 32, 4>}, {pipeline_mode = #tpu.pipeline_mode<synchronous>, transform_indices = @transform_2, window_bounds = array<i64: 4, 6, 32>}, {pipeline_mode = #tpu.pipeline_mode<synchronous>, transform_indices = @transform_3, window_bounds = array<i64: 4, 1, 32>}, {pipeline_mode = #tpu.pipeline_mode<synchronous>, transform_indices = @transform_4, window_bounds = array<i64: 4, 32, 2>}, {pipeline_mode = #tpu.pipeline_mode<synchronous>, transform_indices = @transform_5, window_bounds = array<i64: 4, 32, 2>}, {pipeline_mode = #tpu.pipeline_mode<synchronous>, transform_indices = @transform_6, window_bounds = array<i64: 4, 1, 2>}, {pipeline_mode = #tpu.pipeline_mode<synchronous>, transform_indices = @transform_7, window_bounds = array<i64: 4, 1, 2>}, {transform_indices = @transform_8, window_bounds = array<i64: 32, 4>}]} {
    %c0 = arith.constant 0 : index
    %c0_0 = arith.constant 0 : index
    %0 = vector.load %arg1[%c0, %c0_0] : memref<32x4xf32, #tpu.memory_space<vmem>>, vector<32x4xf32>
    %1 = vector.extract_strided_slice %0 {offsets = [0, 0], sizes = [32, 2], strides = [1, 1]} : vector<32x4xf32> to vector<32x2xf32>
    %2 = vector.extract_strided_slice %0 {offsets = [0, 2], sizes = [32, 2], strides = [1, 1]} : vector<32x4xf32> to vector<32x2xf32>
    %c0_1 = arith.constant 0 : index
    %c0_2 = arith.constant 0 : index
    %3 = vector.load %arg2[%c0_1, %c0_2] : memref<32x4xbf16, #tpu.memory_space<vmem>>, vector<32x4xbf16>
    %4 = arith.truncf %2 : vector<32x2xf32> to vector<32x2xbf16>
    %5 = tpu.concatenate %4, %3 in 1 : vector<32x2xbf16>, vector<32x4xbf16> -> vector<32x6xbf16>
    %c0_3 = arith.constant 0 : index
    %c0_4 = arith.constant 0 : index
    %c0_5 = arith.constant 0 : index
    %6 = vector.load %arg3[%c0_3, %c0_4, %c0_5] : memref<4x6x32xbf16, #tpu.memory_space<vmem>>, vector<1x6x32xbf16>
    %7 = vector.shape_cast %6 : vector<1x6x32xbf16> to vector<6x32xbf16>
    %cst = arith.constant dense<0.000000e+00> : vector<32x32xf32>
    %8 = tpu.matmul %5, %7, %cst {dimension_numbers = #tpu.dot_dimension_numbers<[1], [0], [0], [1], [0, 0, 1, 1], [], []>} : vector<32x6xbf16>, vector<6x32xbf16>, vector<32x32xf32> -> vector<32x32xf32>
    %c0_6 = arith.constant 0 : index
    %c0_7 = arith.constant 0 : index
    %c0_8 = arith.constant 0 : index
    %9 = vector.load %arg4[%c0_6, %c0_7, %c0_8] : memref<4x1x32xf32, #tpu.memory_space<vmem>>, vector<1x1x32xf32>
    %10 = vector.shape_cast %9 : vector<1x1x32xf32> to vector<1x32xf32>
    %11 = vector.broadcast %10 : vector<1x32xf32> to vector<32x32xf32>
    %12 = arith.addf %8, %11 : vector<32x32xf32>
    %cst_9 = arith.constant 0.000000e+00 : f32
    %13 = vector.broadcast %cst_9 : f32 to vector<32x32xf32>
    %14 = arith.maximumf %12, %13 : vector<32x32xf32>
    %15 = arith.truncf %14 : vector<32x32xf32> to vector<32x32xbf16>
    %c0_10 = arith.constant 0 : index
    %c0_11 = arith.constant 0 : index
    %c0_12 = arith.constant 0 : index
    %16 = vector.load %arg5[%c0_10, %c0_11, %c0_12] : memref<4x32x2xbf16, #tpu.memory_space<vmem>>, vector<1x32x2xbf16>
    %17 = vector.shape_cast %16 : vector<1x32x2xbf16> to vector<32x2xbf16>
    %cst_13 = arith.constant dense<0.000000e+00> : vector<32x2xf32>
    %18 = tpu.matmul %15, %17, %cst_13 {dimension_numbers = #tpu.dot_dimension_numbers<[1], [0], [0], [1], [0, 0, 1, 1], [], []>} : vector<32x32xbf16>, vector<32x2xbf16>, vector<32x2xf32> -> vector<32x2xf32>
    %c0_14 = arith.constant 0 : index
    %c0_15 = arith.constant 0 : index
    %c0_16 = arith.constant 0 : index
    %19 = vector.load %arg7[%c0_14, %c0_15, %c0_16] : memref<4x1x2xf32, #tpu.memory_space<vmem>>, vector<1x1x2xf32>
    %20 = vector.shape_cast %19 : vector<1x1x2xf32> to vector<1x2xf32>
    %21 = vector.broadcast %20 : vector<1x2xf32> to vector<32x2xf32>
    %22 = arith.addf %18, %21 : vector<32x2xf32>
    %23 = math.tanh %22 : vector<32x2xf32>
    %c0_17 = arith.constant 0 : index
    %c0_18 = arith.constant 0 : index
    %c0_19 = arith.constant 0 : index
    %24 = vector.load %arg6[%c0_17, %c0_18, %c0_19] : memref<4x32x2xbf16, #tpu.memory_space<vmem>>, vector<1x32x2xbf16>
    %25 = vector.shape_cast %24 : vector<1x32x2xbf16> to vector<32x2xbf16>
    %cst_20 = arith.constant dense<0.000000e+00> : vector<32x2xf32>
    %26 = tpu.matmul %15, %25, %cst_20 {dimension_numbers = #tpu.dot_dimension_numbers<[1], [0], [0], [1], [0, 0, 1, 1], [], []>} : vector<32x32xbf16>, vector<32x2xbf16>, vector<32x2xf32> -> vector<32x2xf32>
    %c0_21 = arith.constant 0 : index
    %c0_22 = arith.constant 0 : index
    %c0_23 = arith.constant 0 : index
    %27 = vector.load %arg8[%c0_21, %c0_22, %c0_23] : memref<4x1x2xf32, #tpu.memory_space<vmem>>, vector<1x1x2xf32>
    %28 = vector.shape_cast %27 : vector<1x1x2xf32> to vector<1x2xf32>
    %29 = vector.broadcast %28 : vector<1x2xf32> to vector<32x2xf32>
    %30 = arith.addf %26, %29 : vector<32x2xf32>
    %31 = math.exp %23 : vector<32x2xf32>
    %32 = arith.mulf %1, %31 : vector<32x2xf32>
    %33 = arith.addf %32, %30 : vector<32x2xf32>
    %34 = arith.truncf %33 : vector<32x2xf32> to vector<32x2xbf16>
    %35 = tpu.concatenate %34, %3 in 1 : vector<32x2xbf16>, vector<32x4xbf16> -> vector<32x6xbf16>
    %c1 = arith.constant 1 : index
    %c0_24 = arith.constant 0 : index
    %c0_25 = arith.constant 0 : index
    %36 = vector.load %arg3[%c1, %c0_24, %c0_25] : memref<4x6x32xbf16, #tpu.memory_space<vmem>>, vector<1x6x32xbf16>
    %37 = vector.shape_cast %36 : vector<1x6x32xbf16> to vector<6x32xbf16>
    %cst_26 = arith.constant dense<0.000000e+00> : vector<32x32xf32>
    %38 = tpu.matmul %35, %37, %cst_26 {dimension_numbers = #tpu.dot_dimension_numbers<[1], [0], [0], [1], [0, 0, 1, 1], [], []>} : vector<32x6xbf16>, vector<6x32xbf16>, vector<32x32xf32> -> vector<32x32xf32>
    %c1_27 = arith.constant 1 : index
    %c0_28 = arith.constant 0 : index
    %c0_29 = arith.constant 0 : index
    %39 = vector.load %arg4[%c1_27, %c0_28, %c0_29] : memref<4x1x32xf32, #tpu.memory_space<vmem>>, vector<1x1x32xf32>
    %40 = vector.shape_cast %39 : vector<1x1x32xf32> to vector<1x32xf32>
    %41 = vector.broadcast %40 : vector<1x32xf32> to vector<32x32xf32>
    %42 = arith.addf %38, %41 : vector<32x32xf32>
    %cst_30 = arith.constant 0.000000e+00 : f32
    %43 = vector.broadcast %cst_30 : f32 to vector<32x32xf32>
    %44 = arith.maximumf %42, %43 : vector<32x32xf32>
    %45 = arith.truncf %44 : vector<32x32xf32> to vector<32x32xbf16>
    %c1_31 = arith.constant 1 : index
    %c0_32 = arith.constant 0 : index
    %c0_33 = arith.constant 0 : index
    %46 = vector.load %arg5[%c1_31, %c0_32, %c0_33] : memref<4x32x2xbf16, #tpu.memory_space<vmem>>, vector<1x32x2xbf16>
    %47 = vector.shape_cast %46 : vector<1x32x2xbf16> to vector<32x2xbf16>
    %cst_34 = arith.constant dense<0.000000e+00> : vector<32x2xf32>
    %48 = tpu.matmul %45, %47, %cst_34 {dimension_numbers = #tpu.dot_dimension_numbers<[1], [0], [0], [1], [0, 0, 1, 1], [], []>} : vector<32x32xbf16>, vector<32x2xbf16>, vector<32x2xf32> -> vector<32x2xf32>
    %c1_35 = arith.constant 1 : index
    %c0_36 = arith.constant 0 : index
    %c0_37 = arith.constant 0 : index
    %49 = vector.load %arg7[%c1_35, %c0_36, %c0_37] : memref<4x1x2xf32, #tpu.memory_space<vmem>>, vector<1x1x2xf32>
    %50 = vector.shape_cast %49 : vector<1x1x2xf32> to vector<1x2xf32>
    %51 = vector.broadcast %50 : vector<1x2xf32> to vector<32x2xf32>
    %52 = arith.addf %48, %51 : vector<32x2xf32>
    %53 = math.tanh %52 : vector<32x2xf32>
    %c1_38 = arith.constant 1 : index
    %c0_39 = arith.constant 0 : index
    %c0_40 = arith.constant 0 : index
    %54 = vector.load %arg6[%c1_38, %c0_39, %c0_40] : memref<4x32x2xbf16, #tpu.memory_space<vmem>>, vector<1x32x2xbf16>
    %55 = vector.shape_cast %54 : vector<1x32x2xbf16> to vector<32x2xbf16>
    %cst_41 = arith.constant dense<0.000000e+00> : vector<32x2xf32>
    %56 = tpu.matmul %45, %55, %cst_41 {dimension_numbers = #tpu.dot_dimension_numbers<[1], [0], [0], [1], [0, 0, 1, 1], [], []>} : vector<32x32xbf16>, vector<32x2xbf16>, vector<32x2xf32> -> vector<32x2xf32>
    %c1_42 = arith.constant 1 : index
    %c0_43 = arith.constant 0 : index
    %c0_44 = arith.constant 0 : index
    %57 = vector.load %arg8[%c1_42, %c0_43, %c0_44] : memref<4x1x2xf32, #tpu.memory_space<vmem>>, vector<1x1x2xf32>
    %58 = vector.shape_cast %57 : vector<1x1x2xf32> to vector<1x2xf32>
    %59 = vector.broadcast %58 : vector<1x2xf32> to vector<32x2xf32>
    %60 = arith.addf %56, %59 : vector<32x2xf32>
    %61 = math.exp %53 : vector<32x2xf32>
    %62 = arith.mulf %2, %61 : vector<32x2xf32>
    %63 = arith.addf %62, %60 : vector<32x2xf32>
    %64 = arith.truncf %63 : vector<32x2xf32> to vector<32x2xbf16>
    %65 = tpu.concatenate %64, %3 in 1 : vector<32x2xbf16>, vector<32x4xbf16> -> vector<32x6xbf16>
    %c2 = arith.constant 2 : index
    %c0_45 = arith.constant 0 : index
    %c0_46 = arith.constant 0 : index
    %66 = vector.load %arg3[%c2, %c0_45, %c0_46] : memref<4x6x32xbf16, #tpu.memory_space<vmem>>, vector<1x6x32xbf16>
    %67 = vector.shape_cast %66 : vector<1x6x32xbf16> to vector<6x32xbf16>
    %cst_47 = arith.constant dense<0.000000e+00> : vector<32x32xf32>
    %68 = tpu.matmul %65, %67, %cst_47 {dimension_numbers = #tpu.dot_dimension_numbers<[1], [0], [0], [1], [0, 0, 1, 1], [], []>} : vector<32x6xbf16>, vector<6x32xbf16>, vector<32x32xf32> -> vector<32x32xf32>
    %c2_48 = arith.constant 2 : index
    %c0_49 = arith.constant 0 : index
    %c0_50 = arith.constant 0 : index
    %69 = vector.load %arg4[%c2_48, %c0_49, %c0_50] : memref<4x1x32xf32, #tpu.memory_space<vmem>>, vector<1x1x32xf32>
    %70 = vector.shape_cast %69 : vector<1x1x32xf32> to vector<1x32xf32>
    %71 = vector.broadcast %70 : vector<1x32xf32> to vector<32x32xf32>
    %72 = arith.addf %68, %71 : vector<32x32xf32>
    %cst_51 = arith.constant 0.000000e+00 : f32
    %73 = vector.broadcast %cst_51 : f32 to vector<32x32xf32>
    %74 = arith.maximumf %72, %73 : vector<32x32xf32>
    %75 = arith.truncf %74 : vector<32x32xf32> to vector<32x32xbf16>
    %c2_52 = arith.constant 2 : index
    %c0_53 = arith.constant 0 : index
    %c0_54 = arith.constant 0 : index
    %76 = vector.load %arg5[%c2_52, %c0_53, %c0_54] : memref<4x32x2xbf16, #tpu.memory_space<vmem>>, vector<1x32x2xbf16>
    %77 = vector.shape_cast %76 : vector<1x32x2xbf16> to vector<32x2xbf16>
    %cst_55 = arith.constant dense<0.000000e+00> : vector<32x2xf32>
    %78 = tpu.matmul %75, %77, %cst_55 {dimension_numbers = #tpu.dot_dimension_numbers<[1], [0], [0], [1], [0, 0, 1, 1], [], []>} : vector<32x32xbf16>, vector<32x2xbf16>, vector<32x2xf32> -> vector<32x2xf32>
    %c2_56 = arith.constant 2 : index
    %c0_57 = arith.constant 0 : index
    %c0_58 = arith.constant 0 : index
    %79 = vector.load %arg7[%c2_56, %c0_57, %c0_58] : memref<4x1x2xf32, #tpu.memory_space<vmem>>, vector<1x1x2xf32>
    %80 = vector.shape_cast %79 : vector<1x1x2xf32> to vector<1x2xf32>
    %81 = vector.broadcast %80 : vector<1x2xf32> to vector<32x2xf32>
    %82 = arith.addf %78, %81 : vector<32x2xf32>
    %83 = math.tanh %82 : vector<32x2xf32>
    %c2_59 = arith.constant 2 : index
    %c0_60 = arith.constant 0 : index
    %c0_61 = arith.constant 0 : index
    %84 = vector.load %arg6[%c2_59, %c0_60, %c0_61] : memref<4x32x2xbf16, #tpu.memory_space<vmem>>, vector<1x32x2xbf16>
    %85 = vector.shape_cast %84 : vector<1x32x2xbf16> to vector<32x2xbf16>
    %cst_62 = arith.constant dense<0.000000e+00> : vector<32x2xf32>
    %86 = tpu.matmul %75, %85, %cst_62 {dimension_numbers = #tpu.dot_dimension_numbers<[1], [0], [0], [1], [0, 0, 1, 1], [], []>} : vector<32x32xbf16>, vector<32x2xbf16>, vector<32x2xf32> -> vector<32x2xf32>
    %c2_63 = arith.constant 2 : index
    %c0_64 = arith.constant 0 : index
    %c0_65 = arith.constant 0 : index
    %87 = vector.load %arg8[%c2_63, %c0_64, %c0_65] : memref<4x1x2xf32, #tpu.memory_space<vmem>>, vector<1x1x2xf32>
    %88 = vector.shape_cast %87 : vector<1x1x2xf32> to vector<1x2xf32>
    %89 = vector.broadcast %88 : vector<1x2xf32> to vector<32x2xf32>
    %90 = arith.addf %86, %89 : vector<32x2xf32>
    %91 = math.exp %83 : vector<32x2xf32>
    %92 = arith.mulf %33, %91 : vector<32x2xf32>
    %93 = arith.addf %92, %90 : vector<32x2xf32>
    %94 = arith.truncf %93 : vector<32x2xf32> to vector<32x2xbf16>
    %95 = tpu.concatenate %94, %3 in 1 : vector<32x2xbf16>, vector<32x4xbf16> -> vector<32x6xbf16>
    %c3 = arith.constant 3 : index
    %c0_66 = arith.constant 0 : index
    %c0_67 = arith.constant 0 : index
    %96 = vector.load %arg3[%c3, %c0_66, %c0_67] : memref<4x6x32xbf16, #tpu.memory_space<vmem>>, vector<1x6x32xbf16>
    %97 = vector.shape_cast %96 : vector<1x6x32xbf16> to vector<6x32xbf16>
    %cst_68 = arith.constant dense<0.000000e+00> : vector<32x32xf32>
    %98 = tpu.matmul %95, %97, %cst_68 {dimension_numbers = #tpu.dot_dimension_numbers<[1], [0], [0], [1], [0, 0, 1, 1], [], []>} : vector<32x6xbf16>, vector<6x32xbf16>, vector<32x32xf32> -> vector<32x32xf32>
    %c3_69 = arith.constant 3 : index
    %c0_70 = arith.constant 0 : index
    %c0_71 = arith.constant 0 : index
    %99 = vector.load %arg4[%c3_69, %c0_70, %c0_71] : memref<4x1x32xf32, #tpu.memory_space<vmem>>, vector<1x1x32xf32>
    %100 = vector.shape_cast %99 : vector<1x1x32xf32> to vector<1x32xf32>
    %101 = vector.broadcast %100 : vector<1x32xf32> to vector<32x32xf32>
    %102 = arith.addf %98, %101 : vector<32x32xf32>
    %cst_72 = arith.constant 0.000000e+00 : f32
    %103 = vector.broadcast %cst_72 : f32 to vector<32x32xf32>
    %104 = arith.maximumf %102, %103 : vector<32x32xf32>
    %105 = arith.truncf %104 : vector<32x32xf32> to vector<32x32xbf16>
    %c3_73 = arith.constant 3 : index
    %c0_74 = arith.constant 0 : index
    %c0_75 = arith.constant 0 : index
    %106 = vector.load %arg5[%c3_73, %c0_74, %c0_75] : memref<4x32x2xbf16, #tpu.memory_space<vmem>>, vector<1x32x2xbf16>
    %107 = vector.shape_cast %106 : vector<1x32x2xbf16> to vector<32x2xbf16>
    %cst_76 = arith.constant dense<0.000000e+00> : vector<32x2xf32>
    %108 = tpu.matmul %105, %107, %cst_76 {dimension_numbers = #tpu.dot_dimension_numbers<[1], [0], [0], [1], [0, 0, 1, 1], [], []>} : vector<32x32xbf16>, vector<32x2xbf16>, vector<32x2xf32> -> vector<32x2xf32>
    %c3_77 = arith.constant 3 : index
    %c0_78 = arith.constant 0 : index
    %c0_79 = arith.constant 0 : index
    %109 = vector.load %arg7[%c3_77, %c0_78, %c0_79] : memref<4x1x2xf32, #tpu.memory_space<vmem>>, vector<1x1x2xf32>
    %110 = vector.shape_cast %109 : vector<1x1x2xf32> to vector<1x2xf32>
    %111 = vector.broadcast %110 : vector<1x2xf32> to vector<32x2xf32>
    %112 = arith.addf %108, %111 : vector<32x2xf32>
    %113 = math.tanh %112 : vector<32x2xf32>
    %c3_80 = arith.constant 3 : index
    %c0_81 = arith.constant 0 : index
    %c0_82 = arith.constant 0 : index
    %114 = vector.load %arg6[%c3_80, %c0_81, %c0_82] : memref<4x32x2xbf16, #tpu.memory_space<vmem>>, vector<1x32x2xbf16>
    %115 = vector.shape_cast %114 : vector<1x32x2xbf16> to vector<32x2xbf16>
    %cst_83 = arith.constant dense<0.000000e+00> : vector<32x2xf32>
    %116 = tpu.matmul %105, %115, %cst_83 {dimension_numbers = #tpu.dot_dimension_numbers<[1], [0], [0], [1], [0, 0, 1, 1], [], []>} : vector<32x32xbf16>, vector<32x2xbf16>, vector<32x2xf32> -> vector<32x2xf32>
    %c3_84 = arith.constant 3 : index
    %c0_85 = arith.constant 0 : index
    %c0_86 = arith.constant 0 : index
    %117 = vector.load %arg8[%c3_84, %c0_85, %c0_86] : memref<4x1x2xf32, #tpu.memory_space<vmem>>, vector<1x1x2xf32>
    %118 = vector.shape_cast %117 : vector<1x1x2xf32> to vector<1x2xf32>
    %119 = vector.broadcast %118 : vector<1x2xf32> to vector<32x2xf32>
    %120 = arith.addf %116, %119 : vector<32x2xf32>
    %121 = math.exp %113 : vector<32x2xf32>
    %122 = arith.mulf %63, %121 : vector<32x2xf32>
    %123 = arith.addf %122, %120 : vector<32x2xf32>
    %124 = tpu.concatenate %93, %123 in 1 : vector<32x2xf32>, vector<32x2xf32> -> vector<32x4xf32>
    %c0_87 = arith.constant 0 : index
    %c0_88 = arith.constant 0 : index
    %125 = vector.load %arg9[%c0_87, %c0_88] : memref<32x4xf32, #tpu.memory_space<vmem>>, vector<32x4xf32>
    tpu.vector_store %arg9[%c0_87, %c0_88], %124 {strides = array<i32>} : memref<32x4xf32, #tpu.memory_space<vmem>>, vector<32x4xf32>,
    return
  }
  func.func @transform_0(%arg0: i32) -> (i32, i32) {
    %c0_i32 = arith.constant 0 : i32
    %c0_i32_0 = arith.constant 0 : i32
    return %arg0, %c0_i32 : i32, i32
  }
  func.func @transform_1(%arg0: i32) -> (i32, i32) {
    %c0_i32 = arith.constant 0 : i32
    %c0_i32_0 = arith.constant 0 : i32
    return %arg0, %c0_i32 : i32, i32
  }
  func.func @transform_2(%arg0: i32) -> (i32, i32, i32) {
    %c0_i32 = arith.constant 0 : i32
    %c0_i32_0 = arith.constant 0 : i32
    %c0_i32_1 = arith.constant 0 : i32
    %c0_i32_2 = arith.constant 0 : i32
    return %c0_i32, %c0_i32_0, %c0_i32_1 : i32, i32, i32
  }
  func.func @transform_3(%arg0: i32) -> (i32, i32, i32) {
    %c0_i32 = arith.constant 0 : i32
    %c0_i32_0 = arith.constant 0 : i32
    %c0_i32_1 = arith.constant 0 : i32
    %c0_i32_2 = arith.constant 0 : i32
    return %c0_i32, %c0_i32_0, %c0_i32_1 : i32, i32, i32
  }
  func.func @transform_4(%arg0: i32) -> (i32, i32, i32) {
    %c0_i32 = arith.constant 0 : i32
    %c0_i32_0 = arith.constant 0 : i32
    %c0_i32_1 = arith.constant 0 : i32
    %c0_i32_2 = arith.constant 0 : i32
    return %c0_i32, %c0_i32_0, %c0_i32_1 : i32, i32, i32
  }
  func.func @transform_5(%arg0: i32) -> (i32, i32, i32) {
    %c0_i32 = arith.constant 0 : i32
    %c0_i32_0 = arith.constant 0 : i32
    %c0_i32_1 = arith.constant 0 : i32
    %c0_i32_2 = arith.constant 0 : i32
    return %c0_i32, %c0_i32_0, %c0_i32_1 : i32, i32, i32
  }
  func.func @transform_6(%arg0: i32) -> (i32, i32, i32) {
    %c0_i32 = arith.constant 0 : i32
    %c0_i32_0 = arith.constant 0 : i32
    %c0_i32_1 = arith.constant 0 : i32
    %c0_i32_2 = arith.constant 0 : i32
    return %c0_i32, %c0_i32_0, %c0_i32_1 : i32, i32, i32
  }
  func.func @transform_7(%arg0: i32) -> (i32, i32, i32) {
    %c0_i32 = arith.constant 0 : i32
    %c0_i32_0 = arith.constant 0 : i32
    %c0_i32_1 = arith.constant 0 : i32
    %c0_i32_2 = arith.constant 0 : i32
    return %c0_i32, %c0_i32_0, %c0_i32_1 : i32, i32, i32
  }
  func.func @transform_8(%arg0: i32) -> (i32, i32) {
    %c0_i32 = arith.constant 0 : i32
    %c0_i32_0 = arith.constant 0 : i32
    return %arg0, %c0_i32 : i32, i32
  }
}

module attributes {stable_mosaic.version = 11 : i64} {
  func.func @_spkenc_kernel(%arg0: i32, %arg1: memref<40x4xf32, #tpu.memory_space<vmem>>, %arg2: memref<40x4xf32, #tpu.memory_space<vmem>>, %arg3: memref<40x4xf32, #tpu.memory_space<vmem>>, %arg4: memref<2x40xf32, #tpu.memory_space<vmem>>, %arg5: memref<4x32xbf16, #tpu.memory_space<vmem>>, %arg6: memref<1x32xf32, #tpu.memory_space<vmem>>, %arg7: memref<32x16xbf16, #tpu.memory_space<vmem>>, %arg8: memref<1x16xf32, #tpu.memory_space<vmem>>, %arg9: memref<2x16xf32, #tpu.memory_space<vmem>>, %arg10: memref<2x16xf32, #tpu.memory_space<vmem>>, %arg11: memref<2x16xf32, #tpu.memory_space<vmem>>) attributes {dimension_semantics = [#tpu.dimension_semantics<arbitrary>], iteration_bounds = array<i64: 1>, scalar_prefetch = 0 : i64, scratch_operands = 0 : i64, tpu.core_type = #tpu.core_type<tc>, window_params = [{pipeline_mode = #tpu.pipeline_mode<synchronous>, transform_indices = @transform_0, window_bounds = array<i64: 40, 4>}, {pipeline_mode = #tpu.pipeline_mode<synchronous>, transform_indices = @transform_1, window_bounds = array<i64: 40, 4>}, {pipeline_mode = #tpu.pipeline_mode<synchronous>, transform_indices = @transform_2, window_bounds = array<i64: 40, 4>}, {pipeline_mode = #tpu.pipeline_mode<synchronous>, transform_indices = @transform_3, window_bounds = array<i64: 2, 40>}, {pipeline_mode = #tpu.pipeline_mode<synchronous>, transform_indices = @transform_4, window_bounds = array<i64: 4, 32>}, {pipeline_mode = #tpu.pipeline_mode<synchronous>, transform_indices = @transform_5, window_bounds = array<i64: 1, 32>}, {pipeline_mode = #tpu.pipeline_mode<synchronous>, transform_indices = @transform_6, window_bounds = array<i64: 32, 16>}, {pipeline_mode = #tpu.pipeline_mode<synchronous>, transform_indices = @transform_7, window_bounds = array<i64: 1, 16>}, {pipeline_mode = #tpu.pipeline_mode<synchronous>, transform_indices = @transform_8, window_bounds = array<i64: 2, 16>}, {pipeline_mode = #tpu.pipeline_mode<synchronous>, transform_indices = @transform_9, window_bounds = array<i64: 2, 16>}, {pipeline_mode = #tpu.pipeline_mode<synchronous>, transform_indices = @transform_10, window_bounds = array<i64: 2, 16>}]} {
    %c0 = arith.constant 0 : index
    %c0_0 = arith.constant 0 : index
    %0 = vector.load %arg1[%c0, %c0_0] : memref<40x4xf32, #tpu.memory_space<vmem>>, vector<40x4xf32>
    %1 = arith.truncf %0 : vector<40x4xf32> to vector<40x4xbf16>
    %c0_1 = arith.constant 0 : index
    %c0_2 = arith.constant 0 : index
    %2 = vector.load %arg5[%c0_1, %c0_2] : memref<4x32xbf16, #tpu.memory_space<vmem>>, vector<4x32xbf16>
    %cst = arith.constant dense<0.000000e+00> : vector<40x32xf32>
    %3 = tpu.matmul %1, %2, %cst {dimension_numbers = #tpu.dot_dimension_numbers<[1], [0], [0], [1], [0, 0, 1, 1], [], []>} : vector<40x4xbf16>, vector<4x32xbf16>, vector<40x32xf32> -> vector<40x32xf32>
    %c0_3 = arith.constant 0 : index
    %c0_4 = arith.constant 0 : index
    %4 = vector.load %arg6[%c0_3, %c0_4] : memref<1x32xf32, #tpu.memory_space<vmem>>, vector<1x32xf32>
    %5 = vector.broadcast %4 : vector<1x32xf32> to vector<40x32xf32>
    %6 = arith.addf %3, %5 : vector<40x32xf32>
    %cst_5 = arith.constant 0.000000e+00 : f32
    %7 = vector.broadcast %cst_5 : f32 to vector<40x32xf32>
    %8 = arith.maximumf %6, %7 : vector<40x32xf32>
    %c0_6 = arith.constant 0 : index
    %c0_7 = arith.constant 0 : index
    %9 = vector.load %arg4[%c0_6, %c0_7] : memref<2x40xf32, #tpu.memory_space<vmem>>, vector<2x40xf32>
    %cst_8 = arith.constant dense<0.000000e+00> : vector<2x32xf32>
    %10 = tpu.matmul %9, %8, %cst_8 {dimension_numbers = #tpu.dot_dimension_numbers<[1], [0], [0], [1], [0, 0, 1, 1], [], []>} : vector<2x40xf32>, vector<40x32xf32>, vector<2x32xf32> -> vector<2x32xf32>
    %cst_9 = arith.constant 5.000000e-02 : f32
    %11 = vector.broadcast %cst_9 : f32 to vector<2x32xf32>
    %12 = arith.mulf %10, %11 : vector<2x32xf32>
    %13 = arith.truncf %12 : vector<2x32xf32> to vector<2x32xbf16>
    %c0_10 = arith.constant 0 : index
    %c0_11 = arith.constant 0 : index
    %14 = vector.load %arg7[%c0_10, %c0_11] : memref<32x16xbf16, #tpu.memory_space<vmem>>, vector<32x16xbf16>
    %cst_12 = arith.constant dense<0.000000e+00> : vector<2x16xf32>
    %15 = tpu.matmul %13, %14, %cst_12 {dimension_numbers = #tpu.dot_dimension_numbers<[1], [0], [0], [1], [0, 0, 1, 1], [], []>} : vector<2x32xbf16>, vector<32x16xbf16>, vector<2x16xf32> -> vector<2x16xf32>
    %c0_13 = arith.constant 0 : index
    %c0_14 = arith.constant 0 : index
    %16 = vector.load %arg8[%c0_13, %c0_14] : memref<1x16xf32, #tpu.memory_space<vmem>>, vector<1x16xf32>
    %17 = vector.broadcast %16 : vector<1x16xf32> to vector<2x16xf32>
    %18 = arith.addf %15, %17 : vector<2x16xf32>
    %c0_15 = arith.constant 0 : index
    %c0_16 = arith.constant 0 : index
    %19 = vector.load %arg9[%c0_15, %c0_16] : memref<2x16xf32, #tpu.memory_space<vmem>>, vector<2x16xf32>
    tpu.vector_store %arg9[%c0_15, %c0_16], %18 {strides = array<i32>} : memref<2x16xf32, #tpu.memory_space<vmem>>, vector<2x16xf32>,
    %c0_17 = arith.constant 0 : index
    %c0_18 = arith.constant 0 : index
    %20 = vector.load %arg2[%c0_17, %c0_18] : memref<40x4xf32, #tpu.memory_space<vmem>>, vector<40x4xf32>
    %21 = arith.truncf %20 : vector<40x4xf32> to vector<40x4xbf16>
    %c0_19 = arith.constant 0 : index
    %c0_20 = arith.constant 0 : index
    %22 = vector.load %arg5[%c0_19, %c0_20] : memref<4x32xbf16, #tpu.memory_space<vmem>>, vector<4x32xbf16>
    %cst_21 = arith.constant dense<0.000000e+00> : vector<40x32xf32>
    %23 = tpu.matmul %21, %22, %cst_21 {dimension_numbers = #tpu.dot_dimension_numbers<[1], [0], [0], [1], [0, 0, 1, 1], [], []>} : vector<40x4xbf16>, vector<4x32xbf16>, vector<40x32xf32> -> vector<40x32xf32>
    %c0_22 = arith.constant 0 : index
    %c0_23 = arith.constant 0 : index
    %24 = vector.load %arg6[%c0_22, %c0_23] : memref<1x32xf32, #tpu.memory_space<vmem>>, vector<1x32xf32>
    %25 = vector.broadcast %24 : vector<1x32xf32> to vector<40x32xf32>
    %26 = arith.addf %23, %25 : vector<40x32xf32>
    %cst_24 = arith.constant 0.000000e+00 : f32
    %27 = vector.broadcast %cst_24 : f32 to vector<40x32xf32>
    %28 = arith.maximumf %26, %27 : vector<40x32xf32>
    %c0_25 = arith.constant 0 : index
    %c0_26 = arith.constant 0 : index
    %29 = vector.load %arg4[%c0_25, %c0_26] : memref<2x40xf32, #tpu.memory_space<vmem>>, vector<2x40xf32>
    %cst_27 = arith.constant dense<0.000000e+00> : vector<2x32xf32>
    %30 = tpu.matmul %29, %28, %cst_27 {dimension_numbers = #tpu.dot_dimension_numbers<[1], [0], [0], [1], [0, 0, 1, 1], [], []>} : vector<2x40xf32>, vector<40x32xf32>, vector<2x32xf32> -> vector<2x32xf32>
    %cst_28 = arith.constant 5.000000e-02 : f32
    %31 = vector.broadcast %cst_28 : f32 to vector<2x32xf32>
    %32 = arith.mulf %30, %31 : vector<2x32xf32>
    %33 = arith.truncf %32 : vector<2x32xf32> to vector<2x32xbf16>
    %c0_29 = arith.constant 0 : index
    %c0_30 = arith.constant 0 : index
    %34 = vector.load %arg7[%c0_29, %c0_30] : memref<32x16xbf16, #tpu.memory_space<vmem>>, vector<32x16xbf16>
    %cst_31 = arith.constant dense<0.000000e+00> : vector<2x16xf32>
    %35 = tpu.matmul %33, %34, %cst_31 {dimension_numbers = #tpu.dot_dimension_numbers<[1], [0], [0], [1], [0, 0, 1, 1], [], []>} : vector<2x32xbf16>, vector<32x16xbf16>, vector<2x16xf32> -> vector<2x16xf32>
    %c0_32 = arith.constant 0 : index
    %c0_33 = arith.constant 0 : index
    %36 = vector.load %arg8[%c0_32, %c0_33] : memref<1x16xf32, #tpu.memory_space<vmem>>, vector<1x16xf32>
    %37 = vector.broadcast %36 : vector<1x16xf32> to vector<2x16xf32>
    %38 = arith.addf %35, %37 : vector<2x16xf32>
    %c0_34 = arith.constant 0 : index
    %c0_35 = arith.constant 0 : index
    %39 = vector.load %arg10[%c0_34, %c0_35] : memref<2x16xf32, #tpu.memory_space<vmem>>, vector<2x16xf32>
    tpu.vector_store %arg10[%c0_34, %c0_35], %38 {strides = array<i32>} : memref<2x16xf32, #tpu.memory_space<vmem>>, vector<2x16xf32>,
    %c0_36 = arith.constant 0 : index
    %c0_37 = arith.constant 0 : index
    %40 = vector.load %arg3[%c0_36, %c0_37] : memref<40x4xf32, #tpu.memory_space<vmem>>, vector<40x4xf32>
    %41 = arith.truncf %40 : vector<40x4xf32> to vector<40x4xbf16>
    %c0_38 = arith.constant 0 : index
    %c0_39 = arith.constant 0 : index
    %42 = vector.load %arg5[%c0_38, %c0_39] : memref<4x32xbf16, #tpu.memory_space<vmem>>, vector<4x32xbf16>
    %cst_40 = arith.constant dense<0.000000e+00> : vector<40x32xf32>
    %43 = tpu.matmul %41, %42, %cst_40 {dimension_numbers = #tpu.dot_dimension_numbers<[1], [0], [0], [1], [0, 0, 1, 1], [], []>} : vector<40x4xbf16>, vector<4x32xbf16>, vector<40x32xf32> -> vector<40x32xf32>
    %c0_41 = arith.constant 0 : index
    %c0_42 = arith.constant 0 : index
    %44 = vector.load %arg6[%c0_41, %c0_42] : memref<1x32xf32, #tpu.memory_space<vmem>>, vector<1x32xf32>
    %45 = vector.broadcast %44 : vector<1x32xf32> to vector<40x32xf32>
    %46 = arith.addf %43, %45 : vector<40x32xf32>
    %cst_43 = arith.constant 0.000000e+00 : f32
    %47 = vector.broadcast %cst_43 : f32 to vector<40x32xf32>
    %48 = arith.maximumf %46, %47 : vector<40x32xf32>
    %c0_44 = arith.constant 0 : index
    %c0_45 = arith.constant 0 : index
    %49 = vector.load %arg4[%c0_44, %c0_45] : memref<2x40xf32, #tpu.memory_space<vmem>>, vector<2x40xf32>
    %cst_46 = arith.constant dense<0.000000e+00> : vector<2x32xf32>
    %50 = tpu.matmul %49, %48, %cst_46 {dimension_numbers = #tpu.dot_dimension_numbers<[1], [0], [0], [1], [0, 0, 1, 1], [], []>} : vector<2x40xf32>, vector<40x32xf32>, vector<2x32xf32> -> vector<2x32xf32>
    %cst_47 = arith.constant 5.000000e-02 : f32
    %51 = vector.broadcast %cst_47 : f32 to vector<2x32xf32>
    %52 = arith.mulf %50, %51 : vector<2x32xf32>
    %53 = arith.truncf %52 : vector<2x32xf32> to vector<2x32xbf16>
    %c0_48 = arith.constant 0 : index
    %c0_49 = arith.constant 0 : index
    %54 = vector.load %arg7[%c0_48, %c0_49] : memref<32x16xbf16, #tpu.memory_space<vmem>>, vector<32x16xbf16>
    %cst_50 = arith.constant dense<0.000000e+00> : vector<2x16xf32>
    %55 = tpu.matmul %53, %54, %cst_50 {dimension_numbers = #tpu.dot_dimension_numbers<[1], [0], [0], [1], [0, 0, 1, 1], [], []>} : vector<2x32xbf16>, vector<32x16xbf16>, vector<2x16xf32> -> vector<2x16xf32>
    %c0_51 = arith.constant 0 : index
    %c0_52 = arith.constant 0 : index
    %56 = vector.load %arg8[%c0_51, %c0_52] : memref<1x16xf32, #tpu.memory_space<vmem>>, vector<1x16xf32>
    %57 = vector.broadcast %56 : vector<1x16xf32> to vector<2x16xf32>
    %58 = arith.addf %55, %57 : vector<2x16xf32>
    %c0_53 = arith.constant 0 : index
    %c0_54 = arith.constant 0 : index
    %59 = vector.load %arg11[%c0_53, %c0_54] : memref<2x16xf32, #tpu.memory_space<vmem>>, vector<2x16xf32>
    tpu.vector_store %arg11[%c0_53, %c0_54], %58 {strides = array<i32>} : memref<2x16xf32, #tpu.memory_space<vmem>>, vector<2x16xf32>,
    return
  }
  func.func @transform_0(%arg0: i32) -> (i32, i32) {
    %c0_i32 = arith.constant 0 : i32
    %c0_i32_0 = arith.constant 0 : i32
    %c0_i32_1 = arith.constant 0 : i32
    return %c0_i32, %c0_i32_0 : i32, i32
  }
  func.func @transform_1(%arg0: i32) -> (i32, i32) {
    %c0_i32 = arith.constant 0 : i32
    %c0_i32_0 = arith.constant 0 : i32
    %c0_i32_1 = arith.constant 0 : i32
    return %c0_i32, %c0_i32_0 : i32, i32
  }
  func.func @transform_2(%arg0: i32) -> (i32, i32) {
    %c0_i32 = arith.constant 0 : i32
    %c0_i32_0 = arith.constant 0 : i32
    %c0_i32_1 = arith.constant 0 : i32
    return %c0_i32, %c0_i32_0 : i32, i32
  }
  func.func @transform_3(%arg0: i32) -> (i32, i32) {
    %c0_i32 = arith.constant 0 : i32
    %c0_i32_0 = arith.constant 0 : i32
    %c0_i32_1 = arith.constant 0 : i32
    return %c0_i32, %c0_i32_0 : i32, i32
  }
  func.func @transform_4(%arg0: i32) -> (i32, i32) {
    %c0_i32 = arith.constant 0 : i32
    %c0_i32_0 = arith.constant 0 : i32
    %c0_i32_1 = arith.constant 0 : i32
    return %c0_i32, %c0_i32_0 : i32, i32
  }
  func.func @transform_5(%arg0: i32) -> (i32, i32) {
    %c0_i32 = arith.constant 0 : i32
    %c0_i32_0 = arith.constant 0 : i32
    %c0_i32_1 = arith.constant 0 : i32
    return %c0_i32, %c0_i32_0 : i32, i32
  }
  func.func @transform_6(%arg0: i32) -> (i32, i32) {
    %c0_i32 = arith.constant 0 : i32
    %c0_i32_0 = arith.constant 0 : i32
    %c0_i32_1 = arith.constant 0 : i32
    return %c0_i32, %c0_i32_0 : i32, i32
  }
  func.func @transform_7(%arg0: i32) -> (i32, i32) {
    %c0_i32 = arith.constant 0 : i32
    %c0_i32_0 = arith.constant 0 : i32
    %c0_i32_1 = arith.constant 0 : i32
    return %c0_i32, %c0_i32_0 : i32, i32
  }
  func.func @transform_8(%arg0: i32) -> (i32, i32) {
    %c0_i32 = arith.constant 0 : i32
    %c0_i32_0 = arith.constant 0 : i32
    %c0_i32_1 = arith.constant 0 : i32
    return %c0_i32, %c0_i32_0 : i32, i32
  }
  func.func @transform_9(%arg0: i32) -> (i32, i32) {
    %c0_i32 = arith.constant 0 : i32
    %c0_i32_0 = arith.constant 0 : i32
    %c0_i32_1 = arith.constant 0 : i32
    return %c0_i32, %c0_i32_0 : i32, i32
  }
  func.func @transform_10(%arg0: i32) -> (i32, i32) {
    %c0_i32 = arith.constant 0 : i32
    %c0_i32_0 = arith.constant 0 : i32
    %c0_i32_1 = arith.constant 0 : i32
    return %c0_i32, %c0_i32_0 : i32, i32
  }
}

</mosaic_0001>

<llo_original>
// kernel: rsa_v0_forward.3
$region0: #{rsa_v0_forward.3}
  #allocation0 [shape = 'u32[]', space=smem, size = 0x4, offset = 0x4, fixed_abs, tag = 'smem constant byte address 0x4 - core index']
  #allocation1 [shape = 'u32[72,128]{1,0:T(1,128)}', space=vmem, size = 0x9000, scoped, tag = 'internal scratch']
  %s0 = inlined_call_operand.vmem [shape: f32[40,4], index: 0, kind: input, shape index: {}]
  %s1 = inlined_call_operand.vmem [shape: f32[40,4], index: 1, kind: input, shape index: {}]
  %s2 = inlined_call_operand.vmem [shape: f32[40,4], index: 2, kind: input, shape index: {}]
  %s3 = inlined_call_operand.vmem [shape: f32[2,40], index: 3, kind: input, shape index: {}]
  %s4 = inlined_call_operand.vmem [shape: bf16[4,32], index: 4, kind: input, shape index: {}]
  %s5 = inlined_call_operand.vmem [shape: f32[1,32], index: 5, kind: input, shape index: {}]
  %s6 = inlined_call_operand.vmem [shape: bf16[32,16], index: 6, kind: input, shape index: {}]
  %s7 = inlined_call_operand.vmem [shape: f32[1,16], index: 7, kind: input, shape index: {}]
  %s8 = inlined_call_operand.hbm [shape: f32[2,16], index: 8, kind: output, shape index: {0}]
  %s9 = inlined_call_operand.hbm [shape: f32[2,16], index: 9, kind: output, shape index: {1}]
  %s10 = inlined_call_operand.hbm [shape: f32[2,16], index: 10, kind: output, shape index: {2}]
  %11 = xla_tuple %s8, %s9, %s10
  %s12 = sld [smem:[#allocation0]]
  $region58: #{rsa_v0_forward.3} parent=0
    _
  %s14 = ssub.s32 1, %s12
  %s15 = scalar_select 0, %s14, %s12
  $region1: #{rsa_v0_forward.3} parent=0
    #allocation2 [shape = 'u8[1024]{0}', space=vmem, size = 0x400, scoped, tag = 'output window, operand 0, single buffered']
    #allocation3 [shape = 's32[1]{0}', space=sflag, size = 0x4, scoped, tag = 'scoped memory for rsa_v0_forward.3']
    #allocation4 [shape = 'u8[1024]{0}', space=vmem, size = 0x400, scoped, tag = 'output window, operand 1, single buffered']
    #allocation5 [shape = 's32[1]{0}', space=sflag, size = 0x4, scoped, tag = 'scoped memory for rsa_v0_forward.3']
    #allocation6 [shape = 'u8[1024]{0}', space=vmem, size = 0x400, scoped, tag = 'output window, operand 2, single buffered']
    %16 = vsyncpa [#allocation3], 0
    %17 = vsyncpa [#allocation5], 0
    // Predicated region
    $region2: #{rsa_v0_forward.3} parent=1 // pred_check
      _
    $region3: #{rsa_v0_forward.3} parent=1 // pred_check_branch
      %19 = sbr.rel (0) target = $region5
    $region4: #{rsa_v0_forward.3} parent=1 // pred_region
      _
    $region5: #{rsa_v0_forward.3} parent=1 // pred_fallthru
      _
    // Predicated region
    $region6: #{rsa_v0_forward.3} parent=1 // pred_check
      _
    $region7: #{rsa_v0_forward.3} parent=1 // pred_check_branch
      %21 = sbr.rel (0) target = $region9
    $region8: #{rsa_v0_forward.3} parent=1 // pred_region
      _
    $region9: #{rsa_v0_forward.3} parent=1 // pred_fallthru
      _
    // Predicated region
    $region10: #{rsa_v0_forward.3} parent=1 // pred_check
      _
    $region11: #{rsa_v0_forward.3} parent=1 // pred_check_branch
      %23 = sbr.rel (0) target = $region13
    $region12: #{rsa_v0_forward.3} parent=1 // pred_region
      _
    $region13: #{rsa_v0_forward.3} parent=1 // pred_fallthru
      _
    // Predicated region
    $region14: #{rsa_v0_forward.3} parent=1 // pred_check
      _
    $region15: #{rsa_v0_forward.3} parent=1 // pred_check_branch
      %25 = sbr.rel (0) target = $region17
    $region16: #{rsa_v0_forward.3} parent=1 // pred_region
      _
    $region17: #{rsa_v0_forward.3} parent=1 // pred_fallthru
      _
    // Predicated region
    $region18: #{rsa_v0_forward.3} parent=1 // pred_check
      _
    $region19: #{rsa_v0_forward.3} parent=1 // pred_check_branch
      %27 = sbr.rel (0) target = $region21
    $region20: #{rsa_v0_forward.3} parent=1 // pred_region
      _
    $region21: #{rsa_v0_forward.3} parent=1 // pred_fallthru
      _
    // Predicated region
    $region22: #{rsa_v0_forward.3} parent=1 // pred_check
      _
    $region23: #{rsa_v0_forward.3} parent=1 // pred_check_branch
      %29 = sbr.rel (0) target = $region25
    $region24: #{rsa_v0_forward.3} parent=1 // pred_region
      _
    $region25: #{rsa_v0_forward.3} parent=1 // pred_fallthru
      _
    // Predicated region
    $region26: #{rsa_v0_forward.3} parent=1 // pred_check
      _
    $region27: #{rsa_v0_forward.3} parent=1 // pred_check_branch
      %31 = sbr.rel (0) target = $region29
    $region28: #{rsa_v0_forward.3} parent=1 // pred_region
      _
    $region29: #{rsa_v0_forward.3} parent=1 // pred_fallthru
      _
    // Predicated region
    $region30: #{rsa_v0_forward.3} parent=1 // pred_check
      _
    $region31: #{rsa_v0_forward.3} parent=1 // pred_check_branch
      %33 = sbr.rel (0) target = $region33
    $region32: #{rsa_v0_forward.3} parent=1 // pred_region
      _
    $region33: #{rsa_v0_forward.3} parent=1 // pred_fallthru
      _
    %v35 = vld [vmem:[%s0] sm:$0xff]
    %v36 = vld [vmem:[%s0 + $0x8] sm:$0xff]
    %v37 = vld [vmem:[%s0 + $0x10] sm:$0xff]
    %v38 = vld [vmem:[%s0 + $0x18] sm:$0xff]
    %v39 = vld [vmem:[%s0 + $0x20] sm:$0xff]
    %v40 = vpack.c.bf16 %v36, %v35
    %v41 = vpack.c.bf16 %v38, %v37
    %v42 = vpack.c.bf16 %v39, %v39
    %v43 = vld [vmem:[%s4] sm:$0x3]
    %v44 = vld [vmem:[%s5] sm:$0x1]
    %v46 = vperm.slane %v44, 0
    %vm48 = vcmask 31744
    %v50 = vsel %vm48, %v40, 0
    %v53 = vsel %vm48, %v41, 0
    %v56 = vsel %vm48, %v42, 0
    %vm58 = vcmask 1041408
    %v60 = vsel %vm58, %v43, 0
    %62 = vmatpush.bf16.msra.mxu0 0
    %63 = vmatpush.bf16.msra.mxu0 0
    %64 = vmatpush.bf16.msra.mxu0 0
    %65 = vmatpush.bf16.msra.mxu0 0
    %66 = vmatpush.bf16.msra.mxu0 0
    %67 = vmatpush.bf16.msra.mxu0 0
    %68 = vmatpush.bf16.msra.mxu0 0
    %69 = vmatpush.bf16.msra.mxu0 %v60
    %70 = vmatmul.bf16.gmra.mxu0 %v50
    %v71 = vpop.f32.mrf.mxu0
    %v72 = vadd.f32 %v46, %v71
    %v73 = vpop.f32.mrf.mxu0
    %v74 = vadd.f32 %v46, %v73
    %75 = vmatmul.bf16.gmra.mxu0 %v53
    %v76 = vpop.f32.mrf.mxu0
    %v77 = vadd.f32 %v46, %v76
    %v78 = vpop.f32.mrf.mxu0
    %v79 = vadd.f32 %v46, %v78
    %80 = vmatmul.bf16.gmra.mxu0 %v56
    %v81 = vpop.f32.mrf.mxu0
    %v82 = vadd.f32 %v46, %v81
    %v83 = vpop.f32.mrf.mxu0
    %84 = vdwg.mxu0
    %v85 = vmax.f32 %v72, 0.0
    %v86 = vmax.f32 %v74, 0.0
    %v87 = vmax.f32 %v77, 0.0
    %v88 = vmax.f32 %v79, 0.0
    %v89 = vmax.f32 %v82, 0.0
    %v90 = vld [vmem:[%s3] sm:$0x3]
    %vm91 = vcmask 326656
    %v93 = vsel %vm91, %v90, 0
    %95 = vmatpush.msra.mxu0 0.0
    %96 = vmatpush.msra.mxu0 0.0
    %97 = vmatpush.msra.mxu0 0.0
    %98 = vmatpush.msra.mxu0 0.0
    %99 = vmatpush.msra.mxu0 0.0
    %100 = vmatpush.msra.mxu0 0.0
    %101 = vmatpush.msra.mxu0 0.0
    %102 = vmatpush.msra.mxu0 0.0
    %103 = vmatpush.msra.mxu0 0.0
    %104 = vmatpush.msra.mxu0 0.0
    %105 = vmatpush.msra.mxu0 0.0
    %106 = vmatpush.msra.mxu0 %v89
    %107 = vmatpush.msra.mxu0 %v88
    %108 = vmatpush.msra.mxu0 %v87
    %109 = vmatpush.msra.mxu0 %v86
    %110 = vmatpush.msra.mxu0 %v85
    %111 = vmatmul.f32.gmra.mxu0 %v93
    %v112 = vpop.f32.mrf.mxu0
    %v113 = vadd.f32 0.0, %v112
    %114 = vdwg.mxu0
    %v115 = vmul.f32 %v113, 0.05
    %v116 = vpack.c.bf16 %v115, %v115
    %v117 = vld [vmem:[%s6] sm:$0xf]
    %v118 = vld [vmem:[%s6 + $0x4] sm:$0xf]
    %v119 = vld [vmem:[%s6 + $0x8] sm:$0xf]
    %v120 = vld [vmem:[%s6 + $0xc] sm:$0xf]
    %v121 = vld [vmem:[%s7] sm:$0x1]
    %v123 = vperm.slane %v121, 0
    %v129 = vunpack.c.l.b16 %v117
    %v130 = vunpack.c.l.b16 %v118
    %v131 = vunpack.c.l.b16 %v119
    %v132 = vunpack.c.l.b16 %v120
    %v133 = vpack.c.b16 %v130, %v129
    %v134 = vpack.c.b16 %v132, %v131
    %vm137 = vcmask 261120
    %v139 = vsel %vm137, %v116, 0
    %141 = vmatpush.bf16.msra.mxu0 0
    %142 = vmatpush.bf16.msra.mxu0 0
    %143 = vmatpush.bf16.msra.mxu0 0
    %144 = vmatpush.bf16.msra.mxu0 0
    %145 = vmatpush.bf16.msra.mxu0 0
    %146 = vmatpush.bf16.msra.mxu0 0
    %147 = vmatpush.bf16.msra.mxu0 %v134
    %148 = vmatpush.bf16.msra.mxu0 %v133
    %149 = vmatmul.bf16.gmra.mxu0 %v139
    %v150 = vpop.f32.mrf.mxu0
    %v151 = vadd.f32 %v123, %v150
    %v152 = vpop.f32.mrf.mxu0
    %153 = vdwg.mxu0
    %vm154 = vcmask 123904
    %155 = vst.msk [vmem:[#allocation2] sm:$0x3] %vm154, %v151
    %v156 = vld [vmem:[%s1] sm:$0xff]
    %v157 = vld [vmem:[%s1 + $0x8] sm:$0xff]
    %v158 = vld [vmem:[%s1 + $0x10] sm:$0xff]
    %v159 = vld [vmem:[%s1 + $0x18] sm:$0xff]
    %v160 = vld [vmem:[%s1 + $0x20] sm:$0xff]
    %v161 = vpack.c.bf16 %v157, %v156
    %v162 = vpack.c.bf16 %v159, %v158
    %v163 = vpack.c.bf16 %v160, %v160
    %v164 = vld [vmem:[%s4] sm:$0x3]
    %v165 = vld [vmem:[%s5] sm:$0x1]
    %v167 = vperm.slane %v165, 0
    %v170 = vsel %vm48, %v161, 0
    %v173 = vsel %vm48, %v162, 0
    %v176 = vsel %vm48, %v163, 0
    %v179 = vsel %vm58, %v164, 0
    %181 = vmatpush.bf16.msra.mxu0 0
    %182 = vmatpush.bf16.msra.mxu0 0
    %183 = vmatpush.bf16.msra.mxu0 0
    %184 = vmatpush.bf16.msra.mxu0 0
    %185 = vmatpush.bf16.msra.mxu0 0
    %186 = vmatpush.bf16.msra.mxu0 0
    %187 = vmatpush.bf16.msra.mxu0 0
    %188 = vmatpush.bf16.msra.mxu0 %v179
    %189 = vmatmul.bf16.gmra.mxu0 %v170
    %v190 = vpop.f32.mrf.mxu0
    %v191 = vadd.f32 %v167, %v190
    %v192 = vpop.f32.mrf.mxu0
    %v193 = vadd.f32 %v167, %v192
    %194 = vmatmul.bf16.gmra.mxu0 %v173
    %v195 = vpop.f32.mrf.mxu0
    %v196 = vadd.f32 %v167, %v195
    %v197 = vpop.f32.mrf.mxu0
    %v198 = vadd.f32 %v167, %v197
    %199 = vmatmul.bf16.gmra.mxu0 %v176
    %v200 = vpop.f32.mrf.mxu0
    %v201 = vadd.f32 %v167, %v200
    %v202 = vpop.f32.mrf.mxu0
    %203 = vdwg.mxu0
    %v204 = vmax.f32 %v191, 0.0
    %v205 = vmax.f32 %v193, 0.0
    %v206 = vmax.f32 %v196, 0.0
    %v207 = vmax.f32 %v198, 0.0
    %v208 = vmax.f32 %v201, 0.0
    %v209 = vld [vmem:[%s3] sm:$0x3]
    %v211 = vsel %vm91, %v209, 0
    %213 = vmatpush.msra.mxu0 0.0
    %214 = vmatpush.msra.mxu0 0.0
    %215 = vmatpush.msra.mxu0 0.0
    %216 = vmatpush.msra.mxu0 0.0
    %217 = vmatpush.msra.mxu0 0.0
    %218 = vmatpush.msra.mxu0 0.0
    %219 = vmatpush.msra.mxu0 0.0
    %220 = vmatpush.msra.mxu0 0.0
    %221 = vmatpush.msra.mxu0 0.0
    %222 = vmatpush.msra.mxu0 0.0
    %223 = vmatpush.msra.mxu0 0.0
    %224 = vmatpush.msra.mxu0 %v208
    %225 = vmatpush.msra.mxu0 %v207
    %226 = vmatpush.msra.mxu0 %v206
    %227 = vmatpush.msra.mxu0 %v205
    %228 = vmatpush.msra.mxu0 %v204
    %229 = vmatmul.f32.gmra.mxu0 %v211
    %v230 = vpop.f32.mrf.mxu0
    %v231 = vadd.f32 0.0, %v230
    %232 = vdwg.mxu0
    %v233 = vmul.f32 %v231, 0.05
    %v234 = vpack.c.bf16 %v233, %v233
    %v235 = vld [vmem:[%s6] sm:$0xf]
    %v236 = vld [vmem:[%s6 + $0x4] sm:$0xf]
    %v237 = vld [vmem:[%s6 + $0x8] sm:$0xf]
    %v238 = vld [vmem:[%s6 + $0xc] sm:$0xf]
    %v239 = vld [vmem:[%s7] sm:$0x1]
    %v241 = vperm.slane %v239, 0
    %v247 = vunpack.c.l.b16 %v235
    %v248 = vunpack.c.l.b16 %v236
    %v249 = vunpack.c.l.b16 %v237
    %v250 = vunpack.c.l.b16 %v238
    %v251 = vpack.c.b16 %v248, %v247
    %v252 = vpack.c.b16 %v250, %v249
    %v256 = vsel %vm137, %v234, 0
    %258 = vmatpush.bf16.msra.mxu0 0
    %259 = vmatpush.bf16.msra.mxu0 0
    %260 = vmatpush.bf16.msra.mxu0 0
    %261 = vmatpush.bf16.msra.mxu0 0
    %262 = vmatpush.bf16.msra.mxu0 0
    %263 = vmatpush.bf16.msra.mxu0 0
    %264 = vmatpush.bf16.msra.mxu0 %v252
    %265 = vmatpush.bf16.msra.mxu0 %v251
    %266 = vmatmul.bf16.gmra.mxu0 %v256
    %v267 = vpop.f32.mrf.mxu0
    %v268 = vadd.f32 %v241, %v267
    %v269 = vpop.f32.mrf.mxu0
    %270 = vdwg.mxu0
    %271 = vst.msk [vmem:[#allocation4] sm:$0x3] %vm154, %v268
    %v272 = vld [vmem:[%s2] sm:$0xff]
    %v273 = vld [vmem:[%s2 + $0x8] sm:$0xff]
    %v274 = vld [vmem:[%s2 + $0x10] sm:$0xff]
    %v275 = vld [vmem:[%s2 + $0x18] sm:$0xff]
    %v276 = vld [vmem:[%s2 + $0x20] sm:$0xff]
    %v277 = vpack.c.bf16 %v273, %v272
    %v278 = vpack.c.bf16 %v275, %v274
    %v279 = vpack.c.bf16 %v276, %v276
    %v280 = vld [vmem:[%s4] sm:$0x3]
    %v281 = vld [vmem:[%s5] sm:$0x1]
    %v283 = vperm.slane %v281, 0
    %v286 = vsel %vm48, %v277, 0
    %v289 = vsel %vm48, %v278, 0
    %v292 = vsel %vm48, %v279, 0
    %v295 = vsel %vm58, %v280, 0
    %297 = vmatpush.bf16.msra.mxu0 0
    %298 = vmatpush.bf16.msra.mxu0 0
    %299 = vmatpush.bf16.msra.mxu0 0
    %300 = vmatpush.bf16.msra.mxu0 0
    %301 = vmatpush.bf16.msra.mxu0 0
    %302 = vmatpush.bf16.msra.mxu0 0
    %303 = vmatpush.bf16.msra.mxu0 0
    %304 = vmatpush.bf16.msra.mxu0 %v295
    %305 = vmatmul.bf16.gmra.mxu0 %v286
    %v306 = vpop.f32.mrf.mxu0
    %v307 = vadd.f32 %v283, %v306
    %v308 = vpop.f32.mrf.mxu0
    %v309 = vadd.f32 %v283, %v308
    %310 = vmatmul.bf16.gmra.mxu0 %v289
    %v311 = vpop.f32.mrf.mxu0
    %v312 = vadd.f32 %v283, %v311
    %v313 = vpop.f32.mrf.mxu0
    %v314 = vadd.f32 %v283, %v313
    %315 = vmatmul.bf16.gmra.mxu0 %v292
    %v316 = vpop.f32.mrf.mxu0
    %v317 = vadd.f32 %v283, %v316
    %v318 = vpop.f32.mrf.mxu0
    %319 = vdwg.mxu0
    %v320 = vmax.f32 %v307, 0.0
    %v321 = vmax.f32 %v309, 0.0
    %v322 = vmax.f32 %v312, 0.0
    %v323 = vmax.f32 %v314, 0.0
    %v324 = vmax.f32 %v317, 0.0
    %v325 = vld [vmem:[%s3] sm:$0x3]
    %v327 = vsel %vm91, %v325, 0
    %329 = vmatpush.msra.mxu0 0.0
    %330 = vmatpush.msra.mxu0 0.0
    %331 = vmatpush.msra.mxu0 0.0
    %332 = vmatpush.msra.mxu0 0.0
    %333 = vmatpush.msra.mxu0 0.0
    %334 = vmatpush.msra.mxu0 0.0
    %335 = vmatpush.msra.mxu0 0.0
    %336 = vmatpush.msra.mxu0 0.0
    %337 = vmatpush.msra.mxu0 0.0
    %338 = vmatpush.msra.mxu0 0.0
    %339 = vmatpush.msra.mxu0 0.0
    %340 = vmatpush.msra.mxu0 %v324
    %341 = vmatpush.msra.mxu0 %v323
    %342 = vmatpush.msra.mxu0 %v322
    %343 = vmatpush.msra.mxu0 %v321
    %344 = vmatpush.msra.mxu0 %v320
    %345 = vmatmul.f32.gmra.mxu0 %v327
    %v346 = vpop.f32.mrf.mxu0
    %v347 = vadd.f32 0.0, %v346
    %348 = vdwg.mxu0
    %v349 = vmul.f32 %v347, 0.05
    %v350 = vpack.c.bf16 %v349, %v349
    %v351 = vld [vmem:[%s6] sm:$0xf]
    %v352 = vld [vmem:[%s6 + $0x4] sm:$0xf]
    %v353 = vld [vmem:[%s6 + $0x8] sm:$0xf]
    %v354 = vld [vmem:[%s6 + $0xc] sm:$0xf]
    %v355 = vld [vmem:[%s7] sm:$0x1]
    %v357 = vperm.slane %v355, 0
    %v363 = vunpack.c.l.b16 %v351
    %v364 = vunpack.c.l.b16 %v352
    %v365 = vunpack.c.l.b16 %v353
    %v366 = vunpack.c.l.b16 %v354
    %v367 = vpack.c.b16 %v364, %v363
    %v368 = vpack.c.b16 %v366, %v365
    %v372 = vsel %vm137, %v350, 0
    %374 = vmatpush.bf16.msra.mxu0 0
    %375 = vmatpush.bf16.msra.mxu0 0
    %376 = vmatpush.bf16.msra.mxu0 0
    %377 = vmatpush.bf16.msra.mxu0 0
    %378 = vmatpush.bf16.msra.mxu0 0
    %379 = vmatpush.bf16.msra.mxu0 0
    %380 = vmatpush.bf16.msra.mxu0 %v368
    %381 = vmatpush.bf16.msra.mxu0 %v367
    %382 = vmatmul.bf16.gmra.mxu0 %v372
    %v383 = vpop.f32.mrf.mxu0
    %v384 = vadd.f32 %v357, %v383
    %v385 = vpop.f32.mrf.mxu0
    %386 = vdwg.mxu0
    %387 = vst.msk [vmem:[#allocation6] sm:$0x3] %vm154, %v384
    // Predicated region
    $region34: #{rsa_v0_forward.3} parent=1 // pred_check
      _
    $region35: #{rsa_v0_forward.3} parent=1 // pred_check_branch
      %389 = sbr.rel (0) target = $region37
    $region36: #{rsa_v0_forward.3} parent=1 // pred_region
      %391 = vsyncadd [#allocation3], 0
      %s393 = sshll.u32 [#allocation2], 4
      %s394 = int_to_ptr.vmem [resolvable:$true] %s393
      %s395 = sshll.u32 %s8, 4
      %s396 = int_to_ptr.hbm [resolvable:$true] %s395
      %398 = dma.vmem_to_hbm [thread:$0]  %s394, 32, %s396, [#allocation3]
    $region37: #{rsa_v0_forward.3} parent=1 // pred_fallthru
      _
    // Predicated region
    $region38: #{rsa_v0_forward.3} parent=1 // pred_check
      _
    $region39: #{rsa_v0_forward.3} parent=1 // pred_check_branch
      %400 = sbr.rel (0) target = $region41
    $region40: #{rsa_v0_forward.3} parent=1 // pred_region
      %402 = vsyncadd [#allocation5], 0
      %s404 = sshll.u32 [#allocation4], 4
      %s405 = int_to_ptr.vmem [resolvable:$true] %s404
      %s406 = sshll.u32 %s9, 4
      %s407 = int_to_ptr.hbm [resolvable:$true] %s406
      %409 = dma.vmem_to_hbm [thread:$0]  %s405, 32, %s407, [#allocation5]
    $region41: #{rsa_v0_forward.3} parent=1 // pred_fallthru
      _
    // Predicated region
    $region42: #{rsa_v0_forward.3} parent=1 // pred_check
      _
    $region43: #{rsa_v0_forward.3} parent=1 // pred_check_branch
      %411 = sbr.rel (0) target = $region45
    $region44: #{rsa_v0_forward.3} parent=1 // pred_region
      %413 = vsyncadd [#allocation5], 0
      %s415 = sshll.u32 [#allocation6], 4
      %s416 = int_to_ptr.vmem [resolvable:$true] %s415
      %s417 = sshll.u32 %s10, 4
      %s418 = int_to_ptr.hbm [resolvable:$true] %s417
      %420 = dma.vmem_to_hbm [thread:$0]  %s416, 32, %s418, [#allocation5]
    $region45: #{rsa_v0_forward.3} parent=1 // pred_fallthru
      _
    // Predicated region
    $region46: #{rsa_v0_forward.3} parent=1 // pred_check
      _
    $region47: #{rsa_v0_forward.3} parent=1 // pred_check_branch
      %422 = sbr.rel (0) target = $region49
    $region48: #{rsa_v0_forward.3} parent=1 // pred_region
      %424 = dma.done [#allocation3], 32
    $region49: #{rsa_v0_forward.3} parent=1 // pred_fallthru
      _
    // Predicated region
    $region50: #{rsa_v0_forward.3} parent=1 // pred_check
      _
    $region51: #{rsa_v0_forward.3} parent=1 // pred_check_branch
      %426 = sbr.rel (0) target = $region53
    $region52: #{rsa_v0_forward.3} parent=1 // pred_region
      %428 = dma.done [#allocation5], 32
    $region53: #{rsa_v0_forward.3} parent=1 // pred_fallthru
      _
    // Predicated region
    $region54: #{rsa_v0_forward.3} parent=1 // pred_check
      _
    $region55: #{rsa_v0_forward.3} parent=1 // pred_check_branch
      %430 = sbr.rel (0) target = $region57
    $region56: #{rsa_v0_forward.3} parent=1 // pred_region
      %432 = dma.done [#allocation5], 32
    $region57: #{rsa_v0_forward.3} parent=1 // pred_fallthru
      _
    %433 = vsyncpa [#allocation3], 1
    %434 = vsyncpa [#allocation5], 1

// kernel: rsa_v0_forward.2
$region0: #{rsa_v0_forward.2}
  #allocation0 [shape = 'u32[]', space=smem, size = 0x4, offset = 0x4, fixed_abs, tag = 'smem constant byte address 0x4 - core index']
  #allocation1 [shape = 'u32[72,128]{1,0:T(1,128)}', space=vmem, size = 0x9000, scoped, tag = 'internal scratch']
  %s0 = inlined_call_operand.vmem [shape: f32[64,4], index: 0, kind: input, shape index: {}]
  %s1 = inlined_call_operand.vmem [shape: bf16[64,4], index: 1, kind: input, shape index: {}]
  %s2 = inlined_call_operand.vmem [shape: bf16[4,6,32], index: 2, kind: input, shape index: {}]
  %s3 = inlined_call_operand.vmem [shape: f32[4,1,32], index: 3, kind: input, shape index: {}]
  %s4 = inlined_call_operand.vmem [shape: bf16[4,32,2], index: 4, kind: input, shape index: {}]
  %s5 = inlined_call_operand.vmem [shape: bf16[4,32,2], index: 5, kind: input, shape index: {}]
  %s6 = inlined_call_operand.vmem [shape: f32[4,1,2], index: 6, kind: input, shape index: {}]
  %s7 = inlined_call_operand.vmem [shape: f32[4,1,2], index: 7, kind: input, shape index: {}]
  %s8 = inlined_call_operand.vmem [shape: f32[64,4], index: 8, kind: output, shape index: {}]
  %s9 = sld [smem:[#allocation0]]
  $region65: #{rsa_v0_forward.2} parent=0
    _
  %s11 = ssub.s32 1, %s9
  %s12 = scalar_select 0, %s11, %s9
  loop: start=0, step=1, limit=4
  $region2: #{rsa_v0_forward.2} parent=0 // loop_pre_header
    _
  $region3: #{rsa_v0_forward.2} parent=0 // loop_header
    %s14 = sphi 0, %s18
    %p15 = scmp.ge.s32.totalorder %s14, 4
    %s24 = sphi 0, %s26
    %s27 = sphi 0, %s24
    %s28 = sphi 0, %s27
    %s44 = sphi 0, %s28
    %s50 = sphi 0, %s52
    %s53 = sphi 0, %s50
    %s54 = sphi 0, %s53
    %s70 = sphi 0, %s54
    %s74 = sphi 0, %s74
    %s76 = sphi 0, %s74
    %s77 = sphi 0, %s76
    %s91 = sphi 0, %s77
    %s95 = sphi 0, %s95
    %s97 = sphi 0, %s95
    %s98 = sphi 0, %s97
    %s112 = sphi 0, %s98
    %s116 = sphi 0, %s116
    %s118 = sphi 0, %s116
    %s119 = sphi 0, %s118
    %s133 = sphi 0, %s119
    %s137 = sphi 0, %s137
    %s139 = sphi 0, %s137
    %s140 = sphi 0, %s139
    %s154 = sphi 0, %s140
    %s158 = sphi 0, %s158
    %s160 = sphi 0, %s158
    %s161 = sphi 0, %s160
    %s175 = sphi 0, %s161
    %s179 = sphi 0, %s179
    %s181 = sphi 0, %s179
    %s182 = sphi 0, %s181
    %s196 = sphi 0, %s182
    %s202 = sphi 0, %s204
    %s205 = sphi 0, %s202
    %s206 = sphi 0, %s205
    %s222 = sphi 0, %s206
  $region4: #{rsa_v0_forward.2} parent=0 // loop_header_branch
    %17 = sbr.rel (%p15) target = $region8
  $region5: #{rsa_v0_forward.2} parent=0 // loop_body
    %s19 = ssub.s32 %s14, 1
    %s20 = ssub.s32 %s14, 2
    %s21 = sadd.s32 %s14, 1
    %s22 = ssub.s32 %s14, %s21
    %p23 = scmp.eq.s32.totalorder %s22, 0
    %s25 = sadd.s32 %s24, 1
    %s26 = scalar_select %p23, %s24, %s25
    %p29 = pneg %p23
    %p30 = scmp.eq.s32.totalorder %s14, 1
    %p31 = por %p29, %p30
    %p32 = scmp.ne.s32.totalorder %s24, %s27
    %p33 = scmp.eq.s32.totalorder %s14, 0
    %p34 = por %p32, %p33
    %p35 = scmp.ne.s32.totalorder %s24, %s27
    %p36 = scmp.eq.s32.totalorder %s19, 1
    %p37 = por %p35, %p36
    %p38 = scmp.ne.s32.totalorder %s27, %s28
    %p39 = scmp.eq.s32.totalorder %s19, 0
    %p40 = por %p38, %p39
    %p41 = scmp.ne.s32.totalorder %s27, %s28
    %p42 = scmp.eq.s32.totalorder %s20, 1
    %p43 = por %p41, %p42
    %p45 = scmp.ne.s32.totalorder %s28, %s44
    %p46 = scmp.eq.s32.totalorder %s20, 0
    %p47 = por %p45, %p46
    %s48 = ssub.s32 %s14, %s21
    %p49 = scmp.eq.s32.totalorder %s48, 0
    %s51 = sadd.s32 %s50, 1
    %s52 = scalar_select %p49, %s50, %s51
    %p55 = pneg %p49
    %p56 = scmp.eq.s32.totalorder %s14, 1
    %p57 = por %p55, %p56
    %p58 = scmp.ne.s32.totalorder %s50, %s53
    %p59 = scmp.eq.s32.totalorder %s14, 0
    %p60 = por %p58, %p59
    %p61 = scmp.ne.s32.totalorder %s50, %s53
    %p62 = scmp.eq.s32.totalorder %s19, 1
    %p63 = por %p61, %p62
    %p64 = scmp.ne.s32.totalorder %s53, %s54
    %p65 = scmp.eq.s32.totalorder %s19, 0
    %p66 = por %p64, %p65
    %p67 = scmp.ne.s32.totalorder %s53, %s54
    %p68 = scmp.eq.s32.totalorder %s20, 1
    %p69 = por %p67, %p68
    %p71 = scmp.ne.s32.totalorder %s54, %s70
    %p72 = scmp.eq.s32.totalorder %s20, 0
    %p73 = por %p71, %p72
    %s75 = sadd.s32 %s74, 1
    %p78 = scmp.eq.s32.totalorder %s14, 1
    %p79 = scmp.ne.s32.totalorder %s74, %s76
    %p80 = scmp.eq.s32.totalorder %s14, 0
    %p81 = por %p79, %p80
    %p82 = scmp.ne.s32.totalorder %s74, %s76
    %p83 = scmp.eq.s32.totalorder %s19, 1
    %p84 = por %p82, %p83
    %p85 = scmp.ne.s32.totalorder %s76, %s77
    %p86 = scmp.eq.s32.totalorder %s19, 0
    %p87 = por %p85, %p86
    %p88 = scmp.ne.s32.totalorder %s76, %s77
    %p89 = scmp.eq.s32.totalorder %s20, 1
    %p90 = por %p88, %p89
    %p92 = scmp.ne.s32.totalorder %s77, %s91
    %p93 = scmp.eq.s32.totalorder %s20, 0
    %p94 = por %p92, %p93
    %s96 = sadd.s32 %s95, 1
    %p99 = scmp.eq.s32.totalorder %s14, 1
    %p100 = scmp.ne.s32.totalorder %s95, %s97
    %p101 = scmp.eq.s32.totalorder %s14, 0
    %p102 = por %p100, %p101
    %p103 = scmp.ne.s32.totalorder %s95, %s97
    %p104 = scmp.eq.s32.totalorder %s19, 1
    %p105 = por %p103, %p104
    %p106 = scmp.ne.s32.totalorder %s97, %s98
    %p107 = scmp.eq.s32.totalorder %s19, 0
    %p108 = por %p106, %p107
    %p109 = scmp.ne.s32.totalorder %s97, %s98
    %p110 = scmp.eq.s32.totalorder %s20, 1
    %p111 = por %p109, %p110
    %p113 = scmp.ne.s32.totalorder %s98, %s112
    %p114 = scmp.eq.s32.totalorder %s20, 0
    %p115 = por %p113, %p114
    %s117 = sadd.s32 %s116, 1
    %p120 = scmp.eq.s32.totalorder %s14, 1
    %p121 = scmp.ne.s32.totalorder %s116, %s118
    %p122 = scmp.eq.s32.totalorder %s14, 0
    %p123 = por %p121, %p122
    %p124 = scmp.ne.s32.totalorder %s116, %s118
    %p125 = scmp.eq.s32.totalorder %s19, 1
    %p126 = por %p124, %p125
    %p127 = scmp.ne.s32.totalorder %s118, %s119
    %p128 = scmp.eq.s32.totalorder %s19, 0
    %p129 = por %p127, %p128
    %p130 = scmp.ne.s32.totalorder %s118, %s119
    %p131 = scmp.eq.s32.totalorder %s20, 1
    %p132 = por %p130, %p131
    %p134 = scmp.ne.s32.totalorder %s119, %s133
    %p135 = scmp.eq.s32.totalorder %s20, 0
    %p136 = por %p134, %p135
    %s138 = sadd.s32 %s137, 1
    %p141 = scmp.eq.s32.totalorder %s14, 1
    %p142 = scmp.ne.s32.totalorder %s137, %s139
    %p143 = scmp.eq.s32.totalorder %s14, 0
    %p144 = por %p142, %p143
    %p145 = scmp.ne.s32.totalorder %s137, %s139
    %p146 = scmp.eq.s32.totalorder %s19, 1
    %p147 = por %p145, %p146
    %p148 = scmp.ne.s32.totalorder %s139, %s140
    %p149 = scmp.eq.s32.totalorder %s19, 0
    %p150 = por %p148, %p149
    %p151 = scmp.ne.s32.totalorder %s139, %s140
    %p152 = scmp.eq.s32.totalorder %s20, 1
    %p153 = por %p151, %p152
    %p155 = scmp.ne.s32.totalorder %s140, %s154
    %p156 = scmp.eq.s32.totalorder %s20, 0
    %p157 = por %p155, %p156
    %s159 = sadd.s32 %s158, 1
    %p162 = scmp.eq.s32.totalorder %s14, 1
    %p163 = scmp.ne.s32.totalorder %s158, %s160
    %p164 = scmp.eq.s32.totalorder %s14, 0
    %p165 = por %p163, %p164
    %p166 = scmp.ne.s32.totalorder %s158, %s160
    %p167 = scmp.eq.s32.totalorder %s19, 1
    %p168 = por %p166, %p167
    %p169 = scmp.ne.s32.totalorder %s160, %s161
    %p170 = scmp.eq.s32.totalorder %s19, 0
    %p171 = por %p169, %p170
    %p172 = scmp.ne.s32.totalorder %s160, %s161
    %p173 = scmp.eq.s32.totalorder %s20, 1
    %p174 = por %p172, %p173
    %p176 = scmp.ne.s32.totalorder %s161, %s175
    %p177 = scmp.eq.s32.totalorder %s20, 0
    %p178 = por %p176, %p177
    %s180 = sadd.s32 %s179, 1
    %p183 = scmp.eq.s32.totalorder %s14, 1
    %p184 = scmp.ne.s32.totalorder %s179, %s181
    %p185 = scmp.eq.s32.totalorder %s14, 0
    %p186 = por %p184, %p185
    %p187 = scmp.ne.s32.totalorder %s179, %s181
    %p188 = scmp.eq.s32.totalorder %s19, 1
    %p189 = por %p187, %p188
    %p190 = scmp.ne.s32.totalorder %s181, %s182
    %p191 = scmp.eq.s32.totalorder %s19, 0
    %p192 = por %p190, %p191
    %p193 = scmp.ne.s32.totalorder %s181, %s182
    %p194 = scmp.eq.s32.totalorder %s20, 1
    %p195 = por %p193, %p194
    %p197 = scmp.ne.s32.totalorder %s182, %s196
    %p198 = scmp.eq.s32.totalorder %s20, 0
    %p199 = por %p197, %p198
    %s200 = ssub.s32 %s14, %s21
    %p201 = scmp.eq.s32.totalorder %s200, 0
    %s203 = sadd.s32 %s202, 1
    %s204 = scalar_select %p201, %s202, %s203
    %p207 = pneg %p201
    %p208 = scmp.eq.s32.totalorder %s14, 1
    %p209 = por %p207, %p208
    %p210 = scmp.ne.s32.totalorder %s202, %s205
    %p211 = scmp.eq.s32.totalorder %s14, 0
    %p212 = por %p210, %p211
    %p213 = scmp.ne.s32.totalorder %s202, %s205
    %p214 = scmp.eq.s32.totalorder %s19, 1
    %p215 = por %p213, %p214
    %p216 = scmp.ne.s32.totalorder %s205, %s206
    %p217 = scmp.eq.s32.totalorder %s19, 0
    %p218 = por %p216, %p217
    %p219 = scmp.ne.s32.totalorder %s205, %s206
    %p220 = scmp.eq.s32.totalorder %s20, 1
    %p221 = por %p219, %p220
    %p223 = scmp.ne.s32.totalorder %s206, %s222
    %p224 = scmp.eq.s32.totalorder %s20, 0
    %p225 = por %p223, %p224
    %p226 = scmp.le.s32.totalorder 1, %s14
    %p227 = scmp.lt.s32.totalorder %s14, 3
    %p228 = pnand %p226, %p227
    %p229 = pneg %p228
    // Predicated region
    $region9: #{rsa_v0_forward.2} parent=5 // pred_check
      _
    $region10: #{rsa_v0_forward.2} parent=5 // pred_check_branch
      %231 = sbr.rel (%p228) target = $region12
    $region11: #{rsa_v0_forward.2} parent=5 // pred_region
      %s232 = ssub.s32 %s14, 1
      // Predicated region
      $region13: #{rsa_v0_forward.2} parent=11 // pred_check
        %p233 = pneg %p87
      $region14: #{rsa_v0_forward.2} parent=11 // pred_check_branch
        %235 = sbr.rel (%p233) target = $region16
      $region15: #{rsa_v0_forward.2} parent=11 // pred_region
        _
      $region16: #{rsa_v0_forward.2} parent=11 // pred_fallthru
        _
      // Predicated region
      $region17: #{rsa_v0_forward.2} parent=11 // pred_check
        %p236 = pneg %p108
      $region18: #{rsa_v0_forward.2} parent=11 // pred_check_branch
        %238 = sbr.rel (%p236) target = $region20
      $region19: #{rsa_v0_forward.2} parent=11 // pred_region
        _
      $region20: #{rsa_v0_forward.2} parent=11 // pred_fallthru
        _
      // Predicated region
      $region21: #{rsa_v0_forward.2} parent=11 // pred_check
        %p239 = pneg %p129
      $region22: #{rsa_v0_forward.2} parent=11 // pred_check_branch
        %241 = sbr.rel (%p239) target = $region24
      $region23: #{rsa_v0_forward.2} parent=11 // pred_region
        _
      $region24: #{rsa_v0_forward.2} parent=11 // pred_fallthru
        _
      // Predicated region
      $region25: #{rsa_v0_forward.2} parent=11 // pred_check
        %p242 = pneg %p150
      $region26: #{rsa_v0_forward.2} parent=11 // pred_check_branch
        %244 = sbr.rel (%p242) target = $region28
      $region27: #{rsa_v0_forward.2} parent=11 // pred_region
        _
      $region28: #{rsa_v0_forward.2} parent=11 // pred_fallthru
        _
      // Predicated region
      $region29: #{rsa_v0_forward.2} parent=11 // pred_check
        %p245 = pneg %p171
      $region30: #{rsa_v0_forward.2} parent=11 // pred_check_branch
        %247 = sbr.rel (%p245) target = $region32
      $region31: #{rsa_v0_forward.2} parent=11 // pred_region
        _
      $region32: #{rsa_v0_forward.2} parent=11 // pred_fallthru
        _
      // Predicated region
      $region33: #{rsa_v0_forward.2} parent=11 // pred_check
        %p248 = pneg %p192
      $region34: #{rsa_v0_forward.2} parent=11 // pred_check_branch
        %250 = sbr.rel (%p248) target = $region36
      $region35: #{rsa_v0_forward.2} parent=11 // pred_region
        _
      $region36: #{rsa_v0_forward.2} parent=11 // pred_fallthru
        _
    $region12: #{rsa_v0_forward.2} parent=5 // pred_fallthru
      _
    %p251 = scmp.lt.s32.totalorder %s14, 2
    // Predicated region
    $region37: #{rsa_v0_forward.2} parent=5 // pred_check
      %p252 = pneg %p251
    $region38: #{rsa_v0_forward.2} parent=5 // pred_check_branch
      %254 = sbr.rel (%p252) target = $region40
    $region39: #{rsa_v0_forward.2} parent=5 // pred_region
      // Predicated region
      $region41: #{rsa_v0_forward.2} parent=39 // pred_check
        %p255 = pneg %p34
      $region42: #{rsa_v0_forward.2} parent=39 // pred_check_branch
        %257 = sbr.rel (%p255) target = $region44
      $region43: #{rsa_v0_forward.2} parent=39 // pred_region
        %s258 = smul.u32 4, %s14
        %p259 = scmp.lt.s32.totalorder %s258, 7
        %s260 = scalar_select %p259, %s258, 7
        %s261 = smul.addr %s260, 8
        %s262 = scalar_lea.vmem %s0, %s261
        %s263 = smul.u32 4, %s14
      $region44: #{rsa_v0_forward.2} parent=39 // pred_fallthru
        _
      // Predicated region
      $region45: #{rsa_v0_forward.2} parent=39 // pred_check
        %p264 = pneg %p60
      $region46: #{rsa_v0_forward.2} parent=39 // pred_check_branch
        %266 = sbr.rel (%p264) target = $region48
      $region47: #{rsa_v0_forward.2} parent=39 // pred_region
        %s267 = smul.u32 4, %s14
        %p268 = scmp.lt.s32.totalorder %s267, 7
        %s269 = scalar_select %p268, %s267, 7
        %s270 = smul.addr %s269, 4
        %s271 = scalar_lea.vmem %s1, %s270
        %s272 = smul.u32 4, %s14
      $region48: #{rsa_v0_forward.2} parent=39 // pred_fallthru
        _
    $region40: #{rsa_v0_forward.2} parent=5 // pred_fallthru
      _
    %p273 = scmp.le.s32.totalorder 1, %s14
    %p274 = scmp.lt.s32.totalorder %s14, 3
    %p275 = pnand %p273, %p274
    %p276 = pneg %p275
    // Predicated region
    $region49: #{rsa_v0_forward.2} parent=5 // pred_check
      _
    $region50: #{rsa_v0_forward.2} parent=5 // pred_check_branch
      %278 = sbr.rel (%p275) target = $region52
    $region51: #{rsa_v0_forward.2} parent=5 // pred_region
      %s279 = ssub.s32 %s14, 1
      %s280 = smul.u32 4, %s19
      %p281 = scmp.lt.s32.totalorder %s280, 7
      %s282 = scalar_select %p281, %s280, 7
      %s283 = smul.addr %s282, 8
      %s284 = scalar_lea.vmem %s0, %s283
      %p285 = pneg %p40
      %p286 = pneg %p37
      %s287 = smul.u32 4, %s19
      %p288 = scmp.lt.s32.totalorder %s287, 7
      %s289 = scalar_select %p288, %s287, 7
      %s290 = smul.addr %s289, 4
      %s291 = scalar_lea.vmem %s1, %s290
      %p292 = pneg %p66
      %p293 = pneg %p63
      %p294 = pneg %p87
      %p295 = pneg %p84
      %p296 = pneg %p108
      %p297 = pneg %p105
      %p298 = pneg %p129
      %p299 = pneg %p126
      %p300 = pneg %p150
      %p301 = pneg %p147
      %p302 = pneg %p171
      %p303 = pneg %p168
      %p304 = pneg %p192
      %p305 = pneg %p189
      %p306 = pneg %p218
      %p307 = pneg %p215
      %s308 = smul.u32 4, %s19
      %p309 = scmp.lt.s32.totalorder %s308, 7
      %s310 = scalar_select %p309, %s308, 7
      %s311 = smul.addr %s310, 8
      %s312 = scalar_lea.vmem %s8, %s311
      %s313 = smul.u32 4, %s19
      %p314 = scmp.lt.s32.totalorder %s313, 7
      %s315 = scalar_select %p314, %s313, 7
      %s316 = smul.addr %s315, 8
      %s317 = scalar_lea.vmem %s0, %s316
      %s318 = smul.u32 4, %s19
      %s319 = smul.u32 4, %s19
      %p320 = scmp.lt.s32.totalorder %s319, 7
      %s321 = scalar_select %p320, %s319, 7
      %s322 = smul.addr %s321, 4
      %s323 = scalar_lea.vmem %s1, %s322
      %s324 = smul.u32 4, %s19
      %s325 = smul.u32 4, %s19
      %p326 = scmp.lt.s32.totalorder %s325, 7
      %s327 = scalar_select %p326, %s325, 7
      %s328 = smul.addr %s327, 8
      %s329 = scalar_lea.vmem %s8, %s328
      %s330 = smul.u32 4, %s19
      %v332 = vld [vmem:[%s317] sm:$0xff]
      %v333 = vld [vmem:[%s317 + $0x8] sm:$0xff]
      %v334 = vld [vmem:[%s317 + $0x10] sm:$0xff]
      %v335 = vld [vmem:[%s317 + $0x18] sm:$0xff]
      %v336 = vld [vmem:[%s323] sm:$0xf]
      %v337 = vld [vmem:[%s323 + $0x4] sm:$0xf]
      %v338 = vld [vmem:[%s323 + $0x8] sm:$0xf]
      %v339 = vld [vmem:[%s323 + $0xc] sm:$0xf]
      %v340 = vpack.c.bf16 %v332, %v332
      %v341 = vpack.c.bf16 %v333, %v333
      %v342 = vpack.c.bf16 %v334, %v334
      %v343 = vpack.c.bf16 %v335, %v335
      %v348 = vunpack.c.l.b16 %v340
      %v349 = vunpack.c.l.b16 %v341
      %v350 = vunpack.c.l.b16 %v342
      %v351 = vunpack.c.l.b16 %v343
      %v352 = vpack.c.b16 %v349, %v348
      %v353 = vpack.c.b16 %v351, %v350
      %354 = vrot.lane.b32.xlu0 %v352, 126
      %v355 = vpop.permute.xlu0 %354
      %356 = vrot.lane.b32.xlu0 %v353, 126
      %v357 = vpop.permute.xlu0 %356
      %v362 = vunpack.c.l.b16 %v336
      %v363 = vunpack.c.l.b16 %v337
      %v364 = vunpack.c.l.b16 %v338
      %v365 = vunpack.c.l.b16 %v339
      %v366 = vpack.c.b16 %v363, %v362
      %v367 = vpack.c.b16 %v365, %v364
      %368 = vrot.lane.b32.xlu0 %v366, 2
      %v369 = vpop.permute.xlu0 %368
      %370 = vrot.lane.b32.xlu0 %v367, 2
      %v371 = vpop.permute.xlu0 %370
      %vm372 = vcmask 15360
      %v375 = vsel %vm372, %v355, %v369
      %v378 = vsel %vm372, %v357, %v371
      %v379 = vld [vmem:[%s2] sm:$0x7]
      %v380 = vld [vmem:[%s3] sm:$0x1]
      %v382 = vperm.slane %v380, 0
      %vm384 = vcmask 48128
      %v385 = vsel %vm384, %v375, 0
      %v387 = vsel %vm384, %v378, 0
      %vm389 = vcmask 1042432
      %v391 = vsel %vm389, %v379, 0
      %393 = vmatpush.bf16.msra.mxu0 0
      %394 = vmatpush.bf16.msra.mxu0 0
      %395 = vmatpush.bf16.msra.mxu0 0
      %396 = vmatpush.bf16.msra.mxu0 0
      %397 = vmatpush.bf16.msra.mxu0 0
      %398 = vmatpush.bf16.msra.mxu0 0
      %399 = vmatpush.bf16.msra.mxu0 0
      %400 = vmatpush.bf16.msra.mxu0 %v391
      %401 = vmatmul.bf16.gmra.mxu0 %v385
      %v402 = vpop.f32.mrf.mxu0
      %v403 = vadd.f32 %v382, %v402
      %v404 = vpop.f32.mrf.mxu0
      %v405 = vadd.f32 %v382, %v404
      %406 = vmatmul.bf16.gmra.mxu0 %v387
      %v407 = vpop.f32.mrf.mxu0
      %v408 = vadd.f32 %v382, %v407
      %v409 = vpop.f32.mrf.mxu0
      %v410 = vadd.f32 %v382, %v409
      %411 = vdwg.mxu0
      %v412 = vmax.f32 %v403, 0.0
      %v413 = vmax.f32 %v405, 0.0
      %v414 = vmax.f32 %v408, 0.0
      %v415 = vmax.f32 %v410, 0.0
      %v416 = vpack.c.bf16 %v413, %v412
      %v417 = vpack.c.bf16 %v415, %v414
      %v418 = vld [vmem:[%s4] sm:$0xf]
      %v419 = vld [vmem:[%s4 + $0x4] sm:$0xf]
      %v420 = vld [vmem:[%s4 + $0x8] sm:$0xf]
      %v421 = vld [vmem:[%s4 + $0xc] sm:$0xf]
      %v422 = vld [vmem:[%s6] sm:$0x1]
      %v424 = vperm.slane %v422, 0
      %v430 = vunpack.c.l.b16 %v418
      %v431 = vunpack.c.l.b16 %v419
      %v432 = vunpack.c.l.b16 %v420
      %v433 = vunpack.c.l.b16 %v421
      %v434 = vpack.c.b16 %v431, %v430
      %v435 = vpack.c.b16 %v433, %v432
      %vm438 = vcmask 261120
      %v440 = vsel %vm438, %v416, 0
      %v443 = vsel %vm438, %v417, 0
      %445 = vmatpush.bf16.msra.mxu0 0
      %446 = vmatpush.bf16.msra.mxu0 0
      %447 = vmatpush.bf16.msra.mxu0 0
      %448 = vmatpush.bf16.msra.mxu0 0
      %449 = vmatpush.bf16.msra.mxu0 0
      %450 = vmatpush.bf16.msra.mxu0 0
      %451 = vmatpush.bf16.msra.mxu0 %v435
      %452 = vmatpush.bf16.msra.mxu0 %v434
      %453 = vmatmul.bf16.gmra.mxu0 %v440
      %v454 = vpop.f32.mrf.mxu0
      %v455 = vadd.f32 %v424, %v454
      %v456 = vpop.f32.mrf.mxu0
      %v457 = vadd.f32 %v424, %v456
      %458 = vmatmul.bf16.gmra.mxu0 %v443
      %v459 = vpop.f32.mrf.mxu0
      %v460 = vadd.f32 %v424, %v459
      %v461 = vpop.f32.mrf.mxu0
      %v462 = vadd.f32 %v424, %v461
      %463 = vdwg.mxu0
      %v464 = vtanh.pop %v455
      %v465 = vtanh.pop %v457
      %v466 = vtanh.pop %v460
      %v467 = vtanh.pop %v462
      %v468 = vld [vmem:[%s5] sm:$0xf]
      %v469 = vld [vmem:[%s5 + $0x4] sm:$0xf]
      %v470 = vld [vmem:[%s5 + $0x8] sm:$0xf]
      %v471 = vld [vmem:[%s5 + $0xc] sm:$0xf]
      %v472 = vld [vmem:[%s7] sm:$0x1]
      %v474 = vperm.slane %v472, 0
      %v480 = vunpack.c.l.b16 %v468
      %v481 = vunpack.c.l.b16 %v469
      %v482 = vunpack.c.l.b16 %v470
      %v483 = vunpack.c.l.b16 %v471
      %v484 = vpack.c.b16 %v481, %v480
      %v485 = vpack.c.b16 %v483, %v482
      %488 = vmatpush.bf16.msra.mxu0 0
      %489 = vmatpush.bf16.msra.mxu0 0
      %490 = vmatpush.bf16.msra.mxu0 0
      %491 = vmatpush.bf16.msra.mxu0 0
      %492 = vmatpush.bf16.msra.mxu0 0
      %493 = vmatpush.bf16.msra.mxu0 0
      %494 = vmatpush.bf16.msra.mxu0 %v485
      %495 = vmatpush.bf16.msra.mxu0 %v484
      %496 = vmatmul.bf16.gmra.mxu0 %v440
      %v497 = vpop.f32.mrf.mxu0
      %v498 = vadd.f32 %v474, %v497
      %v499 = vpop.f32.mrf.mxu0
      %v500 = vadd.f32 %v474, %v499
      %501 = vmatmul.bf16.gmra.mxu0 %v443
      %v502 = vpop.f32.mrf.mxu0
      %v503 = vadd.f32 %v474, %v502
      %v504 = vpop.f32.mrf.mxu0
      %v505 = vadd.f32 %v474, %v504
      %506 = vdwg.mxu0
      %v507 = vmul.f32 %v464, 1.442695
      %v508 = vpow.pop %v507
      %v509 = vmul.f32 %v465, 1.442695
      %v510 = vpow.pop %v509
      %v511 = vmul.f32 %v466, 1.442695
      %v512 = vpow.pop %v511
      %v513 = vmul.f32 %v467, 1.442695
      %v514 = vpow.pop %v513
      %v515 = vmul.f32 %v332, %v508
      %v516 = vmul.f32 %v333, %v510
      %v517 = vmul.f32 %v334, %v512
      %v518 = vmul.f32 %v335, %v514
      %v519 = vadd.f32 %v515, %v498
      %v520 = vadd.f32 %v516, %v500
      %v521 = vadd.f32 %v517, %v503
      %v522 = vadd.f32 %v518, %v505
      %v523 = vpack.c.bf16 %v519, %v519
      %v524 = vpack.c.bf16 %v520, %v520
      %v525 = vpack.c.bf16 %v521, %v521
      %v526 = vpack.c.bf16 %v522, %v522
      %v531 = vunpack.c.l.b16 %v523
      %v532 = vunpack.c.l.b16 %v524
      %v533 = vunpack.c.l.b16 %v525
      %v534 = vunpack.c.l.b16 %v526
      %v535 = vpack.c.b16 %v532, %v531
      %v536 = vpack.c.b16 %v534, %v533
      %v538 = vsel %vm372, %v535, %v369
      %v540 = vsel %vm372, %v536, %v371
      %s541 = scalar_lea.vmem %s2, 4
      %v542 = vld [vmem:[%s541] sm:$0x7]
      %s543 = scalar_lea.vmem %s3, 1
      %v544 = vld [vmem:[%s543] sm:$0x1]
      %v546 = vperm.slane %v544, 0
      %v548 = vsel %vm384, %v538, 0
      %v550 = vsel %vm384, %v540, 0
      %v553 = vsel %vm389, %v542, 0
      %555 = vmatpush.bf16.msra.mxu0 0
      %556 = vmatpush.bf16.msra.mxu0 0
      %557 = vmatpush.bf16.msra.mxu0 0
      %558 = vmatpush.bf16.msra.mxu0 0
      %559 = vmatpush.bf16.msra.mxu0 0
      %560 = vmatpush.bf16.msra.mxu0 0
      %561 = vmatpush.bf16.msra.mxu0 0
      %562 = vmatpush.bf16.msra.mxu0 %v553
      %563 = vmatmul.bf16.gmra.mxu0 %v548
      %v564 = vpop.f32.mrf.mxu0
      %v565 = vadd.f32 %v546, %v564
      %v566 = vpop.f32.mrf.mxu0
      %v567 = vadd.f32 %v546, %v566
      %568 = vmatmul.bf16.gmra.mxu0 %v550
      %v569 = vpop.f32.mrf.mxu0
      %v570 = vadd.f32 %v546, %v569
      %v571 = vpop.f32.mrf.mxu0
      %v572 = vadd.f32 %v546, %v571
      %573 = vdwg.mxu0
      %v574 = vmax.f32 %v565, 0.0
      %v575 = vmax.f32 %v567, 0.0
      %v576 = vmax.f32 %v570, 0.0
      %v577 = vmax.f32 %v572, 0.0
      %v578 = vpack.c.bf16 %v575, %v574
      %v579 = vpack.c.bf16 %v577, %v576
      %s580 = scalar_lea.vmem %s4, 16
      %v581 = vld [vmem:[%s580] sm:$0xf]
      %v582 = vld [vmem:[%s580 + $0x4] sm:$0xf]
      %v583 = vld [vmem:[%s580 + $0x8] sm:$0xf]
      %v584 = vld [vmem:[%s580 + $0xc] sm:$0xf]
      %s585 = scalar_lea.vmem %s6, 1
      %v586 = vld [vmem:[%s585] sm:$0x1]
      %v588 = vperm.slane %v586, 0
      %v594 = vunpack.c.l.b16 %v581
      %v595 = vunpack.c.l.b16 %v582
      %v596 = vunpack.c.l.b16 %v583
      %v597 = vunpack.c.l.b16 %v584
      %v598 = vpack.c.b16 %v595, %v594
      %v599 = vpack.c.b16 %v597, %v596
      %v603 = vsel %vm438, %v578, 0
      %v606 = vsel %vm438, %v579, 0
      %608 = vmatpush.bf16.msra.mxu0 0
      %609 = vmatpush.bf16.msra.mxu0 0
      %610 = vmatpush.bf16.msra.mxu0 0
      %611 = vmatpush.bf16.msra.mxu0 0
      %612 = vmatpush.bf16.msra.mxu0 0
      %613 = vmatpush.bf16.msra.mxu0 0
      %614 = vmatpush.bf16.msra.mxu0 %v599
      %615 = vmatpush.bf16.msra.mxu0 %v598
      %616 = vmatmul.bf16.gmra.mxu0 %v603
      %v617 = vpop.f32.mrf.mxu0
      %v618 = vadd.f32 %v588, %v617
      %v619 = vpop.f32.mrf.mxu0
      %v620 = vadd.f32 %v588, %v619
      %621 = vmatmul.bf16.gmra.mxu0 %v606
      %v622 = vpop.f32.mrf.mxu0
      %v623 = vadd.f32 %v588, %v622
      %v624 = vpop.f32.mrf.mxu0
      %v625 = vadd.f32 %v588, %v624
      %626 = vdwg.mxu0
      %v627 = vtanh.pop %v618
      %v628 = vtanh.pop %v620
      %v629 = vtanh.pop %v623
      %v630 = vtanh.pop %v625
      %s631 = scalar_lea.vmem %s5, 16
      %v632 = vld [vmem:[%s631] sm:$0xf]
      %v633 = vld [vmem:[%s631 + $0x4] sm:$0xf]
      %v634 = vld [vmem:[%s631 + $0x8] sm:$0xf]
      %v635 = vld [vmem:[%s631 + $0xc] sm:$0xf]
      %s636 = scalar_lea.vmem %s7, 1
      %v637 = vld [vmem:[%s636] sm:$0x1]
      %v639 = vperm.slane %v637, 0
      %v645 = vunpack.c.l.b16 %v632
      %v646 = vunpack.c.l.b16 %v633
      %v647 = vunpack.c.l.b16 %v634
      %v648 = vunpack.c.l.b16 %v635
      %v649 = vpack.c.b16 %v646, %v645
      %v650 = vpack.c.b16 %v648, %v647
      %653 = vmatpush.bf16.msra.mxu0 0
      %654 = vmatpush.bf16.msra.mxu0 0
      %655 = vmatpush.bf16.msra.mxu0 0
      %656 = vmatpush.bf16.msra.mxu0 0
      %657 = vmatpush.bf16.msra.mxu0 0
      %658 = vmatpush.bf16.msra.mxu0 0
      %659 = vmatpush.bf16.msra.mxu0 %v650
      %660 = vmatpush.bf16.msra.mxu0 %v649
      %661 = vmatmul.bf16.gmra.mxu0 %v603
      %v662 = vpop.f32.mrf.mxu0
      %v663 = vadd.f32 %v639, %v662
      %v664 = vpop.f32.mrf.mxu0
      %v665 = vadd.f32 %v639, %v664
      %666 = vmatmul.bf16.gmra.mxu0 %v606
      %v667 = vpop.f32.mrf.mxu0
      %v668 = vadd.f32 %v639, %v667
      %v669 = vpop.f32.mrf.mxu0
      %v670 = vadd.f32 %v639, %v669
      %671 = vdwg.mxu0
      %v672 = vmul.f32 %v627, 1.442695
      %v673 = vpow.pop %v672
      %v674 = vmul.f32 %v628, 1.442695
      %v675 = vpow.pop %v674
      %v676 = vmul.f32 %v629, 1.442695
      %v677 = vpow.pop %v676
      %v678 = vmul.f32 %v630, 1.442695
      %v679 = vpow.pop %v678
      %684 = vrot.lane.b32.xlu0 %v673, 2
      %v685 = vpop.permute.xlu0 %684
      %686 = vrot.lane.b32.xlu0 %v675, 2
      %v687 = vpop.permute.xlu0 %686
      %688 = vrot.lane.b32.xlu0 %v677, 2
      %v689 = vpop.permute.xlu0 %688
      %690 = vrot.lane.b32.xlu0 %v679, 2
      %v691 = vpop.permute.xlu0 %690
      %v696 = vmul.f32 %v332, %v685
      %v697 = vmul.f32 %v333, %v687
      %v698 = vmul.f32 %v334, %v689
      %v699 = vmul.f32 %v335, %v691
      %704 = vrot.lane.b32.xlu0 %v663, 2
      %v705 = vpop.permute.xlu0 %704
      %706 = vrot.lane.b32.xlu0 %v665, 2
      %v707 = vpop.permute.xlu0 %706
      %708 = vrot.lane.b32.xlu0 %v668, 2
      %v709 = vpop.permute.xlu0 %708
      %710 = vrot.lane.b32.xlu0 %v670, 2
      %v711 = vpop.permute.xlu0 %710
      %v716 = vadd.f32 %v696, %v705
      %v717 = vadd.f32 %v697, %v707
      %v718 = vadd.f32 %v698, %v709
      %v719 = vadd.f32 %v699, %v711
      %v720 = vpack.c.bf16 %v716, %v716
      %v721 = vpack.c.bf16 %v717, %v717
      %v722 = vpack.c.bf16 %v718, %v718
      %v723 = vpack.c.bf16 %v719, %v719
      %v728 = vunpack.c.l.b16 %v720
      %v729 = vunpack.c.l.b16 %v721
      %v730 = vunpack.c.l.b16 %v722
      %v731 = vunpack.c.l.b16 %v723
      %v732 = vpack.c.b16 %v729, %v728
      %v733 = vpack.c.b16 %v731, %v730
      %734 = vrot.lane.b32.xlu0 %v732, 126
      %v735 = vpop.permute.xlu0 %734
      %736 = vrot.lane.b32.xlu0 %v733, 126
      %v737 = vpop.permute.xlu0 %736
      %v739 = vsel %vm372, %v735, %v369
      %v741 = vsel %vm372, %v737, %v371
      %s742 = scalar_lea.vmem %s2, 8
      %v743 = vld [vmem:[%s742] sm:$0x7]
      %s744 = scalar_lea.vmem %s3, 2
      %v745 = vld [vmem:[%s744] sm:$0x1]
      %v747 = vperm.slane %v745, 0
      %v749 = vsel %vm384, %v739, 0
      %v751 = vsel %vm384, %v741, 0
      %v754 = vsel %vm389, %v743, 0
      %756 = vmatpush.bf16.msra.mxu0 0
      %757 = vmatpush.bf16.msra.mxu0 0
      %758 = vmatpush.bf16.msra.mxu0 0
      %759 = vmatpush.bf16.msra.mxu0 0
      %760 = vmatpush.bf16.msra.mxu0 0
      %761 = vmatpush.bf16.msra.mxu0 0
      %762 = vmatpush.bf16.msra.mxu0 0
      %763 = vmatpush.bf16.msra.mxu0 %v754
      %764 = vmatmul.bf16.gmra.mxu0 %v749
      %v765 = vpop.f32.mrf.mxu0
      %v766 = vadd.f32 %v747, %v765
      %v767 = vpop.f32.mrf.mxu0
      %v768 = vadd.f32 %v747, %v767
      %769 = vmatmul.bf16.gmra.mxu0 %v751
      %v770 = vpop.f32.mrf.mxu0
      %v771 = vadd.f32 %v747, %v770
      %v772 = vpop.f32.mrf.mxu0
      %v773 = vadd.f32 %v747, %v772
      %774 = vdwg.mxu0
      %v775 = vmax.f32 %v766, 0.0
      %v776 = vmax.f32 %v768, 0.0
      %v777 = vmax.f32 %v771, 0.0
      %v778 = vmax.f32 %v773, 0.0
      %v779 = vpack.c.bf16 %v776, %v775
      %v780 = vpack.c.bf16 %v778, %v777
      %s781 = scalar_lea.vmem %s4, 32
      %v782 = vld [vmem:[%s781] sm:$0xf]
      %v783 = vld [vmem:[%s781 + $0x4] sm:$0xf]
      %v784 = vld [vmem:[%s781 + $0x8] sm:$0xf]
      %v785 = vld [vmem:[%s781 + $0xc] sm:$0xf]
      %s786 = scalar_lea.vmem %s6, 2
      %v787 = vld [vmem:[%s786] sm:$0x1]
      %v789 = vperm.slane %v787, 0
      %v795 = vunpack.c.l.b16 %v782
      %v796 = vunpack.c.l.b16 %v783
      %v797 = vunpack.c.l.b16 %v784
      %v798 = vunpack.c.l.b16 %v785
      %v799 = vpack.c.b16 %v796, %v795
      %v800 = vpack.c.b16 %v798, %v797
      %v804 = vsel %vm438, %v779, 0
      %v807 = vsel %vm438, %v780, 0
      %809 = vmatpush.bf16.msra.mxu0 0
      %810 = vmatpush.bf16.msra.mxu0 0
      %811 = vmatpush.bf16.msra.mxu0 0
      %812 = vmatpush.bf16.msra.mxu0 0
      %813 = vmatpush.bf16.msra.mxu0 0
      %814 = vmatpush.bf16.msra.mxu0 0
      %815 = vmatpush.bf16.msra.mxu0 %v800
      %816 = vmatpush.bf16.msra.mxu0 %v799
      %817 = vmatmul.bf16.gmra.mxu0 %v804
      %v818 = vpop.f32.mrf.mxu0
      %v819 = vadd.f32 %v789, %v818
      %v820 = vpop.f32.mrf.mxu0
      %v821 = vadd.f32 %v789, %v820
      %822 = vmatmul.bf16.gmra.mxu0 %v807
      %v823 = vpop.f32.mrf.mxu0
      %v824 = vadd.f32 %v789, %v823
      %v825 = vpop.f32.mrf.mxu0
      %v826 = vadd.f32 %v789, %v825
      %827 = vdwg.mxu0
      %v828 = vtanh.pop %v819
      %v829 = vtanh.pop %v821
      %v830 = vtanh.pop %v824
      %v831 = vtanh.pop %v826
      %s832 = scalar_lea.vmem %s5, 32
      %v833 = vld [vmem:[%s832] sm:$0xf]
      %v834 = vld [vmem:[%s832 + $0x4] sm:$0xf]
      %v835 = vld [vmem:[%s832 + $0x8] sm:$0xf]
      %v836 = vld [vmem:[%s832 + $0xc] sm:$0xf]
      %s837 = scalar_lea.vmem %s7, 2
      %v838 = vld [vmem:[%s837] sm:$0x1]
      %v840 = vperm.slane %v838, 0
      %v846 = vunpack.c.l.b16 %v833
      %v847 = vunpack.c.l.b16 %v834
      %v848 = vunpack.c.l.b16 %v835
      %v849 = vunpack.c.l.b16 %v836
      %v850 = vpack.c.b16 %v847, %v846
      %v851 = vpack.c.b16 %v849, %v848
      %854 = vmatpush.bf16.msra.mxu0 0
      %855 = vmatpush.bf16.msra.mxu0 0
      %856 = vmatpush.bf16.msra.mxu0 0
      %857 = vmatpush.bf16.msra.mxu0 0
      %858 = vmatpush.bf16.msra.mxu0 0
      %859 = vmatpush.bf16.msra.mxu0 0
      %860 = vmatpush.bf16.msra.mxu0 %v851
      %861 = vmatpush.bf16.msra.mxu0 %v850
      %862 = vmatmul.bf16.gmra.mxu0 %v804
      %v863 = vpop.f32.mrf.mxu0
      %v864 = vadd.f32 %v840, %v863
      %v865 = vpop.f32.mrf.mxu0
      %v866 = vadd.f32 %v840, %v865
      %867 = vmatmul.bf16.gmra.mxu0 %v807
      %v868 = vpop.f32.mrf.mxu0
      %v869 = vadd.f32 %v840, %v868
      %v870 = vpop.f32.mrf.mxu0
      %v871 = vadd.f32 %v840, %v870
      %872 = vdwg.mxu0
      %v873 = vmul.f32 %v828, 1.442695
      %v874 = vpow.pop %v873
      %v875 = vmul.f32 %v829, 1.442695
      %v876 = vpow.pop %v875
      %v877 = vmul.f32 %v830, 1.442695
      %v878 = vpow.pop %v877
      %v879 = vmul.f32 %v831, 1.442695
      %v880 = vpow.pop %v879
      %v881 = vmul.f32 %v519, %v874
      %v882 = vmul.f32 %v520, %v876
      %v883 = vmul.f32 %v521, %v878
      %v884 = vmul.f32 %v522, %v880
      %v885 = vadd.f32 %v881, %v864
      %v886 = vadd.f32 %v882, %v866
      %v887 = vadd.f32 %v883, %v869
      %v888 = vadd.f32 %v884, %v871
      %v889 = vpack.c.bf16 %v885, %v885
      %v890 = vpack.c.bf16 %v886, %v886
      %v891 = vpack.c.bf16 %v887, %v887
      %v892 = vpack.c.bf16 %v888, %v888
      %v897 = vunpack.c.l.b16 %v889
      %v898 = vunpack.c.l.b16 %v890
      %v899 = vunpack.c.l.b16 %v891
      %v900 = vunpack.c.l.b16 %v892
      %v901 = vpack.c.b16 %v898, %v897
      %v902 = vpack.c.b16 %v900, %v899
      %v904 = vsel %vm372, %v901, %v369
      %v906 = vsel %vm372, %v902, %v371
      %s907 = scalar_lea.vmem %s2, 12
      %v908 = vld [vmem:[%s907] sm:$0x7]
      %s909 = scalar_lea.vmem %s3, 3
      %v910 = vld [vmem:[%s909] sm:$0x1]
      %v912 = vperm.slane %v910, 0
      %v914 = vsel %vm384, %v904, 0
      %v916 = vsel %vm384, %v906, 0
      %v919 = vsel %vm389, %v908, 0
      %921 = vmatpush.bf16.msra.mxu0 0
      %922 = vmatpush.bf16.msra.mxu0 0
      %923 = vmatpush.bf16.msra.mxu0 0
      %924 = vmatpush.bf16.msra.mxu0 0
      %925 = vmatpush.bf16.msra.mxu0 0
      %926 = vmatpush.bf16.msra.mxu0 0
      %927 = vmatpush.bf16.msra.mxu0 0
      %928 = vmatpush.bf16.msra.mxu0 %v919
      %929 = vmatmul.bf16.gmra.mxu0 %v914
      %v930 = vpop.f32.mrf.mxu0
      %v931 = vadd.f32 %v912, %v930
      %v932 = vpop.f32.mrf.mxu0
      %v933 = vadd.f32 %v912, %v932
      %934 = vmatmul.bf16.gmra.mxu0 %v916
      %v935 = vpop.f32.mrf.mxu0
      %v936 = vadd.f32 %v912, %v935
      %v937 = vpop.f32.mrf.mxu0
      %v938 = vadd.f32 %v912, %v937
      %939 = vdwg.mxu0
      %v940 = vmax.f32 %v931, 0.0
      %v941 = vmax.f32 %v933, 0.0
      %v942 = vmax.f32 %v936, 0.0
      %v943 = vmax.f32 %v938, 0.0
      %v944 = vpack.c.bf16 %v941, %v940
      %v945 = vpack.c.bf16 %v943, %v942
      %s946 = scalar_lea.vmem %s4, 48
      %v947 = vld [vmem:[%s946] sm:$0xf]
      %v948 = vld [vmem:[%s946 + $0x4] sm:$0xf]
      %v949 = vld [vmem:[%s946 + $0x8] sm:$0xf]
      %v950 = vld [vmem:[%s946 + $0xc] sm:$0xf]
      %s951 = scalar_lea.vmem %s6, 3
      %v952 = vld [vmem:[%s951] sm:$0x1]
      %v954 = vperm.slane %v952, 0
      %v960 = vunpack.c.l.b16 %v947
      %v961 = vunpack.c.l.b16 %v948
      %v962 = vunpack.c.l.b16 %v949
      %v963 = vunpack.c.l.b16 %v950
      %v964 = vpack.c.b16 %v961, %v960
      %v965 = vpack.c.b16 %v963, %v962
      %v969 = vsel %vm438, %v944, 0
      %v972 = vsel %vm438, %v945, 0
      %974 = vmatpush.bf16.msra.mxu0 0
      %975 = vmatpush.bf16.msra.mxu0 0
      %976 = vmatpush.bf16.msra.mxu0 0
      %977 = vmatpush.bf16.msra.mxu0 0
      %978 = vmatpush.bf16.msra.mxu0 0
      %979 = vmatpush.bf16.msra.mxu0 0
      %980 = vmatpush.bf16.msra.mxu0 %v965
      %981 = vmatpush.bf16.msra.mxu0 %v964
      %982 = vmatmul.bf16.gmra.mxu0 %v969
      %v983 = vpop.f32.mrf.mxu0
      %v984 = vadd.f32 %v954, %v983
      %v985 = vpop.f32.mrf.mxu0
      %v986 = vadd.f32 %v954, %v985
      %987 = vmatmul.bf16.gmra.mxu0 %v972
      %v988 = vpop.f32.mrf.mxu0
      %v989 = vadd.f32 %v954, %v988
      %v990 = vpop.f32.mrf.mxu0
      %v991 = vadd.f32 %v954, %v990
      %992 = vdwg.mxu0
      %v993 = vtanh.pop %v984
      %v994 = vtanh.pop %v986
      %v995 = vtanh.pop %v989
      %v996 = vtanh.pop %v991
      %s997 = scalar_lea.vmem %s5, 48
      %v998 = vld [vmem:[%s997] sm:$0xf]
      %v999 = vld [vmem:[%s997 + $0x4] sm:$0xf]
      %v1000 = vld [vmem:[%s997 + $0x8] sm:$0xf]
      %v1001 = vld [vmem:[%s997 + $0xc] sm:$0xf]
      %s1002 = scalar_lea.vmem %s7, 3
      %v1003 = vld [vmem:[%s1002] sm:$0x1]
      %v1005 = vperm.slane %v1003, 0
      %v1011 = vunpack.c.l.b16 %v998
      %v1012 = vunpack.c.l.b16 %v999
      %v1013 = vunpack.c.l.b16 %v1000
      %v1014 = vunpack.c.l.b16 %v1001
      %v1015 = vpack.c.b16 %v1012, %v1011
      %v1016 = vpack.c.b16 %v1014, %v1013
      %1019 = vmatpush.bf16.msra.mxu0 0
      %1020 = vmatpush.bf16.msra.mxu0 0
      %1021 = vmatpush.bf16.msra.mxu0 0
      %1022 = vmatpush.bf16.msra.mxu0 0
      %1023 = vmatpush.bf16.msra.mxu0 0
      %1024 = vmatpush.bf16.msra.mxu0 0
      %1025 = vmatpush.bf16.msra.mxu0 %v1016
      %1026 = vmatpush.bf16.msra.mxu0 %v1015
      %1027 = vmatmul.bf16.gmra.mxu0 %v969
      %v1028 = vpop.f32.mrf.mxu0
      %v1029 = vadd.f32 %v1005, %v1028
      %v1030 = vpop.f32.mrf.mxu0
      %v1031 = vadd.f32 %v1005, %v1030
      %1032 = vmatmul.bf16.gmra.mxu0 %v972
      %v1033 = vpop.f32.mrf.mxu0
      %v1034 = vadd.f32 %v1005, %v1033
      %v1035 = vpop.f32.mrf.mxu0
      %v1036 = vadd.f32 %v1005, %v1035
      %1037 = vdwg.mxu0
      %v1038 = vmul.f32 %v993, 1.442695
      %v1039 = vpow.pop %v1038
      %v1040 = vmul.f32 %v994, 1.442695
      %v1041 = vpow.pop %v1040
      %v1042 = vmul.f32 %v995, 1.442695
      %v1043 = vpow.pop %v1042
      %v1044 = vmul.f32 %v996, 1.442695
      %v1045 = vpow.pop %v1044
      %1050 = vrot.lane.b32.xlu0 %v1039, 2
      %v1051 = vpop.permute.xlu0 %1050
      %1052 = vrot.lane.b32.xlu0 %v1041, 2
      %v1053 = vpop.permute.xlu0 %1052
      %1054 = vrot.lane.b32.xlu0 %v1043, 2
      %v1055 = vpop.permute.xlu0 %1054
      %1056 = vrot.lane.b32.xlu0 %v1045, 2
      %v1057 = vpop.permute.xlu0 %1056
      %v1062 = vmul.f32 %v716, %v1051
      %v1063 = vmul.f32 %v717, %v1053
      %v1064 = vmul.f32 %v718, %v1055
      %v1065 = vmul.f32 %v719, %v1057
      %1070 = vrot.lane.b32.xlu0 %v1029, 2
      %v1071 = vpop.permute.xlu0 %1070
      %1072 = vrot.lane.b32.xlu0 %v1031, 2
      %v1073 = vpop.permute.xlu0 %1072
      %1074 = vrot.lane.b32.xlu0 %v1034, 2
      %v1075 = vpop.permute.xlu0 %1074
      %1076 = vrot.lane.b32.xlu0 %v1036, 2
      %v1077 = vpop.permute.xlu0 %1076
      %v1082 = vadd.f32 %v1062, %v1071
      %v1083 = vadd.f32 %v1063, %v1073
      %v1084 = vadd.f32 %v1064, %v1075
      %v1085 = vadd.f32 %v1065, %v1077
      %v1086 = vsel %vm372, %v885, %v1082
      %v1087 = vsel %vm372, %v886, %v1083
      %v1088 = vsel %vm372, %v887, %v1084
      %v1089 = vsel %vm372, %v888, %v1085
      %vm1090 = vcmask 31744
      %1091 = vst.msk [vmem:[%s329] sm:$0xff] %vm1090, %v1086
      %1092 = vst.msk [vmem:[%s329 + $0x8] sm:$0xff] %vm1090, %v1087
      %1093 = vst.msk [vmem:[%s329 + $0x10] sm:$0xff] %vm1090, %v1088
      %1094 = vst.msk [vmem:[%s329 + $0x18] sm:$0xff] %vm1090, %v1089
      %s1095 = smul.u32 4, %s19
      %p1096 = scmp.lt.s32.totalorder %s1095, 7
      %s1097 = scalar_select %p1096, %s1095, 7
      %s1098 = smul.addr %s1097, 8
      %s1099 = scalar_lea.vmem %s8, %s1098
      // Predicated region
      $region53: #{rsa_v0_forward.2} parent=51 // pred_check
        %p1100 = pneg %p215
      $region54: #{rsa_v0_forward.2} parent=51 // pred_check_branch
        %1102 = sbr.rel (%p1100) target = $region56
      $region55: #{rsa_v0_forward.2} parent=51 // pred_region
        %s1103 = smul.u32 4, %s19
      $region56: #{rsa_v0_forward.2} parent=51 // pred_fallthru
        _
    $region52: #{rsa_v0_forward.2} parent=5 // pred_fallthru
      _
    %p1104 = scmp.le.s32.totalorder 2, %s14
    // Predicated region
    $region57: #{rsa_v0_forward.2} parent=5 // pred_check
      %p1105 = pneg %p1104
    $region58: #{rsa_v0_forward.2} parent=5 // pred_check_branch
      %1107 = sbr.rel (%p1105) target = $region60
    $region59: #{rsa_v0_forward.2} parent=5 // pred_region
      %s1108 = ssub.s32 %s14, 2
      // Predicated region
      $region61: #{rsa_v0_forward.2} parent=59 // pred_check
        %p1109 = pneg %p221
      $region62: #{rsa_v0_forward.2} parent=59 // pred_check_branch
        %1111 = sbr.rel (%p1109) target = $region64
      $region63: #{rsa_v0_forward.2} parent=59 // pred_region
        %s1112 = smul.u32 4, %s20
        %p1113 = scmp.lt.s32.totalorder %s1112, 7
        %s1114 = scalar_select %p1113, %s1112, 7
        %s1115 = smul.addr %s1114, 8
        %s1116 = scalar_lea.vmem %s8, %s1115
      $region64: #{rsa_v0_forward.2} parent=59 // pred_fallthru
        _
    $region60: #{rsa_v0_forward.2} parent=5 // pred_fallthru
      _
  $region6: #{rsa_v0_forward.2} parent=0 // loop_footer
    %s18 = sadd.s32 1, %s14
  $region7: #{rsa_v0_forward.2} parent=0 // loop_footer_branch
    %13 = sbr.rel target = $region3
  $region8: #{rsa_v0_forward.2} parent=0 // loop_exit
    _

</llo_original>
